<compile_context>
chip_gen: v7x
topology: tpu7x:2x2x1
jax: 0.10.0
libtpu: 0.0.40
codegen_flags: <defaults>
</compile_context>

<pallas_src>
import jax
import jax.numpy as jnp
from jax.experimental import pallas as pl
from jax.experimental.pallas import tpu as pltpu


def _make_encoder_kernel(batch, seq_len, num_layers):
    """Build the fused multi-layer RNN kernel (shapes baked in statically)."""
    B, S, L = batch, seq_len, num_layers

    def kernel(x_ref, *refs):
        # refs layout: L * (w_ih_t, w_hh_t, bias), then y_ref, then seq scratch.
        w_refs = refs[: 3 * L]
        y_ref = refs[3 * L]
        seq_ref = refs[3 * L + 1]

        cur = x_ref[...]                           # (S*B, D_in) of current layer
        for l in range(L):
            w_ih = w_refs[3 * l][...]              # (D_in, H)
            w_hh = w_refs[3 * l + 1][...]          # (H, H)
            bias = w_refs[3 * l + 2][...]          # (1, H)

            # Batched input projection: one big MXU matmul instead of S tiny ones.
            xp = jnp.dot(cur, w_ih, preferred_element_type=jnp.float32) + bias

            out_ref = y_ref if l == L - 1 else seq_ref

            # t = 0: previous hidden state is zero, so h = tanh(xp[0]).
            h = jnp.tanh(xp[0:B, :])
            out_ref[0:B, :] = h

            # Remaining timesteps: only the small (B,H)x(H,H) recurrent matmul
            # is on the serial chain; h stays in registers.
            for t in range(1, S):
                h = jnp.tanh(
                    xp[t * B:(t + 1) * B, :]
                    + jnp.dot(h, w_hh, preferred_element_type=jnp.float32)
                )
                out_ref[t * B:(t + 1) * B, :] = h

            if l < L - 1:
                cur = seq_ref[...]                 # (S*B, H) input to next layer

    return kernel


def encoder_forward(x, params):
    """Encoder.forward: x (B, S, D) -> (B, S, H)."""
    B, S, D = x.shape
    H = params[0]["w_hh_t"].shape[0]
    L = len(params)

    # Time-major, flattened over (seq, batch): row index = t*B + b.
    x_tm = jnp.transpose(x, (1, 0, 2)).reshape(S * B, D)

    flat_weights = []
    for p in params:
        flat_weights.extend((p["w_ih_t"], p["w_hh_t"], p["bias"]))

    # Advisory cost estimate so XLA can schedule around the serial kernel.
    flops = 2 * S * B * H * (D + H) + 2 * (L - 1) * S * B * H * (H + H)
    cost = pl.CostEstimate(
        flops=flops,
        transcendentals=L * S * B * H,
        bytes_accessed=4 * (S * B * (D + H)) + sum(4 * w.size for w in flat_weights),
    )

    y = pl.pallas_call(
        _make_encoder_kernel(B, S, L),
        out_shape=jax.ShapeDtypeStruct((S * B, H), jnp.float32),
        in_specs=[pl.BlockSpec(memory_space=pltpu.VMEM)] * (1 + 3 * L),
        out_specs=pl.BlockSpec(memory_space=pltpu.VMEM),
        scratch_shapes=[pltpu.VMEM((S * B, H), jnp.float32)],
        cost_estimate=cost,
    )(x_tm, *flat_weights)

    # Back to batch_first layout (B, S, H).
    return y.reshape(S, B, H).transpose(1, 0, 2)


encoder_forward_jit = jax.jit(encoder_forward)


def init_encoder_params(key, input_size, hidden_size, num_layers):
    """Deterministic init matching nn.RNN parameter shapes.

    PyTorch shapes: weight_ih_l{k}: (H, D_k), weight_hh_l{k}: (H, H),
                    bias_ih_l{k}: (H,),  bias_hh_l{k}: (H,).
    We store the transposed weights (D_k, H) / (H, H) and the summed bias
    (1, H), which is exactly what the forward pass consumes.
    """
    bound = 1.0 / jnp.sqrt(hidden_size)
    params = []
    for layer in range(num_layers):
        d_in = input_size if layer == 0 else hidden_size
        key, k1, k2, k3, k4 = jax.random.split(key, 5)
        w_ih = jax.random.uniform(k1, (hidden_size, d_in), jnp.float32, -bound, bound)
        w_hh = jax.random.uniform(k2, (hidden_size, hidden_size), jnp.float32, -bound, bound)
        b_ih = jax.random.uniform(k3, (hidden_size,), jnp.float32, -bound, bound)
        b_hh = jax.random.uniform(k4, (hidden_size,), jnp.float32, -bound, bound)
        params.append(
            dict(
                w_ih_t=w_ih.T,                      # (D_k, H)
                w_hh_t=w_hh.T,                      # (H, H)
                bias=(b_ih + b_hh)[None, :],        # (1, H)
            )
        )
    return params


def encoder_forward_ref(x, params):
    """Pure-JAX reference (lax.scan) for correctness checking."""
    h = x
    for p in params:
        B, S, _ = h.shape
        H = p["w_hh_t"].shape[0]

        def step(h_prev, x_t):
            h_new = jnp.tanh(x_t @ p["w_ih_t"] + h_prev @ p["w_hh_t"] + p["bias"][0])
            return h_new, h_new

        h0 = jnp.zeros((B, H), jnp.float32)
        _, ys = jax.lax.scan(step, h0, jnp.swapaxes(h, 0, 1))  # scan over time
        h = jnp.swapaxes(ys, 0, 1)
    return h


if __name__ == "__main__":
    # Small shapes consistent with the module: (batch, seq_len, input_size)
    batch, seq_len, input_size, hidden_size, num_layers = 2, 8, 16, 32, 3

    key = jax.random.PRNGKey(0)
    kx, kp = jax.random.split(key)
    x = jax.random.normal(kx, (batch, seq_len, input_size), jnp.float32)
    params = init_encoder_params(kp, input_size, hidden_size, num_layers)

    out = encoder_forward_jit(x, params)
    out = jax.block_until_ready(out)

    ref = encoder_forward_ref(x, params)
    assert out.shape == (batch, seq_len, hidden_size)
    assert jnp.allclose(out, ref, atol=1e-5, rtol=1e-5), "mismatch vs JAX reference"

    print("KERNEL_OK")
</pallas_src>

<mosaic_0001>
module attributes {stable_mosaic.version = 11 : i64} {
  func.func @kernel(%arg0: memref<16x16xf32, #tpu.memory_space<vmem>>, %arg1: memref<16x32xf32, #tpu.memory_space<vmem>>, %arg2: memref<32x32xf32, #tpu.memory_space<vmem>>, %arg3: memref<1x32xf32, #tpu.memory_space<vmem>>, %arg4: memref<32x32xf32, #tpu.memory_space<vmem>>, %arg5: memref<32x32xf32, #tpu.memory_space<vmem>>, %arg6: memref<1x32xf32, #tpu.memory_space<vmem>>, %arg7: memref<32x32xf32, #tpu.memory_space<vmem>>, %arg8: memref<32x32xf32, #tpu.memory_space<vmem>>, %arg9: memref<1x32xf32, #tpu.memory_space<vmem>>, %arg10: memref<16x32xf32, #tpu.memory_space<vmem>>, %arg11: memref<16x32xf32, #tpu.memory_space<vmem>>) attributes {dimension_semantics = [], scalar_prefetch = 0 : i64, scratch_operands = 1 : i64, tpu.core_type = #tpu.core_type<tc>} {
    %c0 = arith.constant 0 : index
    %c0_0 = arith.constant 0 : index
    %0 = vector.load %arg0[%c0, %c0_0] : memref<16x16xf32, #tpu.memory_space<vmem>>, vector<16x16xf32>
    %c0_1 = arith.constant 0 : index
    %c0_2 = arith.constant 0 : index
    %1 = vector.load %arg1[%c0_1, %c0_2] : memref<16x32xf32, #tpu.memory_space<vmem>>, vector<16x32xf32>
    %c0_3 = arith.constant 0 : index
    %c0_4 = arith.constant 0 : index
    %2 = vector.load %arg2[%c0_3, %c0_4] : memref<32x32xf32, #tpu.memory_space<vmem>>, vector<32x32xf32>
    %c0_5 = arith.constant 0 : index
    %c0_6 = arith.constant 0 : index
    %3 = vector.load %arg3[%c0_5, %c0_6] : memref<1x32xf32, #tpu.memory_space<vmem>>, vector<1x32xf32>
    %cst = arith.constant dense<0.000000e+00> : vector<16x32xf32>
    %4 = tpu.matmul %0, %1, %cst {dimension_numbers = #tpu.dot_dimension_numbers<[1], [0], [0], [1], [0, 0, 1, 1], [], []>} : vector<16x16xf32>, vector<16x32xf32>, vector<16x32xf32> -> vector<16x32xf32>
    %5 = vector.broadcast %3 : vector<1x32xf32> to vector<16x32xf32>
    %6 = arith.addf %4, %5 : vector<16x32xf32>
    %7 = vector.extract_strided_slice %6 {offsets = [0, 0], sizes = [2, 32], strides = [1, 1]} : vector<16x32xf32> to vector<2x32xf32>
    %8 = math.tanh %7 : vector<2x32xf32>
    %c0_7 = arith.constant 0 : index
    %c0_8 = arith.constant 0 : index
    %9 = vector.load %arg11[%c0_7, %c0_8] : memref<16x32xf32, #tpu.memory_space<vmem>>, vector<2x32xf32>
    tpu.vector_store %arg11[%c0_7, %c0_8], %8 {strides = array<i32>} : memref<16x32xf32, #tpu.memory_space<vmem>>, vector<2x32xf32>,
    %10 = vector.extract_strided_slice %6 {offsets = [2, 0], sizes = [2, 32], strides = [1, 1]} : vector<16x32xf32> to vector<2x32xf32>
    %cst_9 = arith.constant dense<0.000000e+00> : vector<2x32xf32>
    %11 = tpu.matmul %8, %2, %cst_9 {dimension_numbers = #tpu.dot_dimension_numbers<[1], [0], [0], [1], [0, 0, 1, 1], [], []>} : vector<2x32xf32>, vector<32x32xf32>, vector<2x32xf32> -> vector<2x32xf32>
    %12 = arith.addf %10, %11 : vector<2x32xf32>
    %13 = math.tanh %12 : vector<2x32xf32>
    %c2 = arith.constant 2 : index
    %c0_10 = arith.constant 0 : index
    %14 = vector.load %arg11[%c2, %c0_10] : memref<16x32xf32, #tpu.memory_space<vmem>>, vector<2x32xf32>
    tpu.vector_store %arg11[%c2, %c0_10], %13 {strides = array<i32>} : memref<16x32xf32, #tpu.memory_space<vmem>>, vector<2x32xf32>,
    %15 = vector.extract_strided_slice %6 {offsets = [4, 0], sizes = [2, 32], strides = [1, 1]} : vector<16x32xf32> to vector<2x32xf32>
    %cst_11 = arith.constant dense<0.000000e+00> : vector<2x32xf32>
    %16 = tpu.matmul %13, %2, %cst_11 {dimension_numbers = #tpu.dot_dimension_numbers<[1], [0], [0], [1], [0, 0, 1, 1], [], []>} : vector<2x32xf32>, vector<32x32xf32>, vector<2x32xf32> -> vector<2x32xf32>
    %17 = arith.addf %15, %16 : vector<2x32xf32>
    %18 = math.tanh %17 : vector<2x32xf32>
    %c4 = arith.constant 4 : index
    %c0_12 = arith.constant 0 : index
    %19 = vector.load %arg11[%c4, %c0_12] : memref<16x32xf32, #tpu.memory_space<vmem>>, vector<2x32xf32>
    tpu.vector_store %arg11[%c4, %c0_12], %18 {strides = array<i32>} : memref<16x32xf32, #tpu.memory_space<vmem>>, vector<2x32xf32>,
    %20 = vector.extract_strided_slice %6 {offsets = [6, 0], sizes = [2, 32], strides = [1, 1]} : vector<16x32xf32> to vector<2x32xf32>
    %cst_13 = arith.constant dense<0.000000e+00> : vector<2x32xf32>
    %21 = tpu.matmul %18, %2, %cst_13 {dimension_numbers = #tpu.dot_dimension_numbers<[1], [0], [0], [1], [0, 0, 1, 1], [], []>} : vector<2x32xf32>, vector<32x32xf32>, vector<2x32xf32> -> vector<2x32xf32>
    %22 = arith.addf %20, %21 : vector<2x32xf32>
    %23 = math.tanh %22 : vector<2x32xf32>
    %c6 = arith.constant 6 : index
    %c0_14 = arith.constant 0 : index
    %24 = vector.load %arg11[%c6, %c0_14] : memref<16x32xf32, #tpu.memory_space<vmem>>, vector<2x32xf32>
    tpu.vector_store %arg11[%c6, %c0_14], %23 {strides = array<i32>} : memref<16x32xf32, #tpu.memory_space<vmem>>, vector<2x32xf32>,
    %25 = vector.extract_strided_slice %6 {offsets = [8, 0], sizes = [2, 32], strides = [1, 1]} : vector<16x32xf32> to vector<2x32xf32>
    %cst_15 = arith.constant dense<0.000000e+00> : vector<2x32xf32>
    %26 = tpu.matmul %23, %2, %cst_15 {dimension_numbers = #tpu.dot_dimension_numbers<[1], [0], [0], [1], [0, 0, 1, 1], [], []>} : vector<2x32xf32>, vector<32x32xf32>, vector<2x32xf32> -> vector<2x32xf32>
    %27 = arith.addf %25, %26 : vector<2x32xf32>
    %28 = math.tanh %27 : vector<2x32xf32>
    %c8 = arith.constant 8 : index
    %c0_16 = arith.constant 0 : index
    %29 = vector.load %arg11[%c8, %c0_16] : memref<16x32xf32, #tpu.memory_space<vmem>>, vector<2x32xf32>
    tpu.vector_store %arg11[%c8, %c0_16], %28 {strides = array<i32>} : memref<16x32xf32, #tpu.memory_space<vmem>>, vector<2x32xf32>,
    %30 = vector.extract_strided_slice %6 {offsets = [10, 0], sizes = [2, 32], strides = [1, 1]} : vector<16x32xf32> to vector<2x32xf32>
    %cst_17 = arith.constant dense<0.000000e+00> : vector<2x32xf32>
    %31 = tpu.matmul %28, %2, %cst_17 {dimension_numbers = #tpu.dot_dimension_numbers<[1], [0], [0], [1], [0, 0, 1, 1], [], []>} : vector<2x32xf32>, vector<32x32xf32>, vector<2x32xf32> -> vector<2x32xf32>
    %32 = arith.addf %30, %31 : vector<2x32xf32>
    %33 = math.tanh %32 : vector<2x32xf32>
    %c10 = arith.constant 10 : index
    %c0_18 = arith.constant 0 : index
    %34 = vector.load %arg11[%c10, %c0_18] : memref<16x32xf32, #tpu.memory_space<vmem>>, vector<2x32xf32>
    tpu.vector_store %arg11[%c10, %c0_18], %33 {strides = array<i32>} : memref<16x32xf32, #tpu.memory_space<vmem>>, vector<2x32xf32>,
    %35 = vector.extract_strided_slice %6 {offsets = [12, 0], sizes = [2, 32], strides = [1, 1]} : vector<16x32xf32> to vector<2x32xf32>
    %cst_19 = arith.constant dense<0.000000e+00> : vector<2x32xf32>
    %36 = tpu.matmul %33, %2, %cst_19 {dimension_numbers = #tpu.dot_dimension_numbers<[1], [0], [0], [1], [0, 0, 1, 1], [], []>} : vector<2x32xf32>, vector<32x32xf32>, vector<2x32xf32> -> vector<2x32xf32>
    %37 = arith.addf %35, %36 : vector<2x32xf32>
    %38 = math.tanh %37 : vector<2x32xf32>
    %c12 = arith.constant 12 : index
    %c0_20 = arith.constant 0 : index
    %39 = vector.load %arg11[%c12, %c0_20] : memref<16x32xf32, #tpu.memory_space<vmem>>, vector<2x32xf32>
    tpu.vector_store %arg11[%c12, %c0_20], %38 {strides = array<i32>} : memref<16x32xf32, #tpu.memory_space<vmem>>, vector<2x32xf32>,
    %40 = vector.extract_strided_slice %6 {offsets = [14, 0], sizes = [2, 32], strides = [1, 1]} : vector<16x32xf32> to vector<2x32xf32>
    %cst_21 = arith.constant dense<0.000000e+00> : vector<2x32xf32>
    %41 = tpu.matmul %38, %2, %cst_21 {dimension_numbers = #tpu.dot_dimension_numbers<[1], [0], [0], [1], [0, 0, 1, 1], [], []>} : vector<2x32xf32>, vector<32x32xf32>, vector<2x32xf32> -> vector<2x32xf32>
    %42 = arith.addf %40, %41 : vector<2x32xf32>
    %43 = math.tanh %42 : vector<2x32xf32>
    %c14 = arith.constant 14 : index
    %c0_22 = arith.constant 0 : index
    %44 = vector.load %arg11[%c14, %c0_22] : memref<16x32xf32, #tpu.memory_space<vmem>>, vector<2x32xf32>
    tpu.vector_store %arg11[%c14, %c0_22], %43 {strides = array<i32>} : memref<16x32xf32, #tpu.memory_space<vmem>>, vector<2x32xf32>,
    %c0_23 = arith.constant 0 : index
    %c0_24 = arith.constant 0 : index
    %45 = vector.load %arg11[%c0_23, %c0_24] : memref<16x32xf32, #tpu.memory_space<vmem>>, vector<16x32xf32>
    %c0_25 = arith.constant 0 : index
    %c0_26 = arith.constant 0 : index
    %46 = vector.load %arg4[%c0_25, %c0_26] : memref<32x32xf32, #tpu.memory_space<vmem>>, vector<32x32xf32>
    %c0_27 = arith.constant 0 : index
    %c0_28 = arith.constant 0 : index
    %47 = vector.load %arg5[%c0_27, %c0_28] : memref<32x32xf32, #tpu.memory_space<vmem>>, vector<32x32xf32>
    %c0_29 = arith.constant 0 : index
    %c0_30 = arith.constant 0 : index
    %48 = vector.load %arg6[%c0_29, %c0_30] : memref<1x32xf32, #tpu.memory_space<vmem>>, vector<1x32xf32>
    %cst_31 = arith.constant dense<0.000000e+00> : vector<16x32xf32>
    %49 = tpu.matmul %45, %46, %cst_31 {dimension_numbers = #tpu.dot_dimension_numbers<[1], [0], [0], [1], [0, 0, 1, 1], [], []>} : vector<16x32xf32>, vector<32x32xf32>, vector<16x32xf32> -> vector<16x32xf32>
    %50 = vector.broadcast %48 : vector<1x32xf32> to vector<16x32xf32>
    %51 = arith.addf %49, %50 : vector<16x32xf32>
    %52 = vector.extract_strided_slice %51 {offsets = [0, 0], sizes = [2, 32], strides = [1, 1]} : vector<16x32xf32> to vector<2x32xf32>
    %53 = math.tanh %52 : vector<2x32xf32>
    %c0_32 = arith.constant 0 : index
    %c0_33 = arith.constant 0 : index
    %54 = vector.load %arg11[%c0_32, %c0_33] : memref<16x32xf32, #tpu.memory_space<vmem>>, vector<2x32xf32>
    tpu.vector_store %arg11[%c0_32, %c0_33], %53 {strides = array<i32>} : memref<16x32xf32, #tpu.memory_space<vmem>>, vector<2x32xf32>,
    %55 = vector.extract_strided_slice %51 {offsets = [2, 0], sizes = [2, 32], strides = [1, 1]} : vector<16x32xf32> to vector<2x32xf32>
    %cst_34 = arith.constant dense<0.000000e+00> : vector<2x32xf32>
    %56 = tpu.matmul %53, %47, %cst_34 {dimension_numbers = #tpu.dot_dimension_numbers<[1], [0], [0], [1], [0, 0, 1, 1], [], []>} : vector<2x32xf32>, vector<32x32xf32>, vector<2x32xf32> -> vector<2x32xf32>
    %57 = arith.addf %55, %56 : vector<2x32xf32>
    %58 = math.tanh %57 : vector<2x32xf32>
    %c2_35 = arith.constant 2 : index
    %c0_36 = arith.constant 0 : index
    %59 = vector.load %arg11[%c2_35, %c0_36] : memref<16x32xf32, #tpu.memory_space<vmem>>, vector<2x32xf32>
    tpu.vector_store %arg11[%c2_35, %c0_36], %58 {strides = array<i32>} : memref<16x32xf32, #tpu.memory_space<vmem>>, vector<2x32xf32>,
    %60 = vector.extract_strided_slice %51 {offsets = [4, 0], sizes = [2, 32], strides = [1, 1]} : vector<16x32xf32> to vector<2x32xf32>
    %cst_37 = arith.constant dense<0.000000e+00> : vector<2x32xf32>
    %61 = tpu.matmul %58, %47, %cst_37 {dimension_numbers = #tpu.dot_dimension_numbers<[1], [0], [0], [1], [0, 0, 1, 1], [], []>} : vector<2x32xf32>, vector<32x32xf32>, vector<2x32xf32> -> vector<2x32xf32>
    %62 = arith.addf %60, %61 : vector<2x32xf32>
    %63 = math.tanh %62 : vector<2x32xf32>
    %c4_38 = arith.constant 4 : index
    %c0_39 = arith.constant 0 : index
    %64 = vector.load %arg11[%c4_38, %c0_39] : memref<16x32xf32, #tpu.memory_space<vmem>>, vector<2x32xf32>
    tpu.vector_store %arg11[%c4_38, %c0_39], %63 {strides = array<i32>} : memref<16x32xf32, #tpu.memory_space<vmem>>, vector<2x32xf32>,
    %65 = vector.extract_strided_slice %51 {offsets = [6, 0], sizes = [2, 32], strides = [1, 1]} : vector<16x32xf32> to vector<2x32xf32>
    %cst_40 = arith.constant dense<0.000000e+00> : vector<2x32xf32>
    %66 = tpu.matmul %63, %47, %cst_40 {dimension_numbers = #tpu.dot_dimension_numbers<[1], [0], [0], [1], [0, 0, 1, 1], [], []>} : vector<2x32xf32>, vector<32x32xf32>, vector<2x32xf32> -> vector<2x32xf32>
    %67 = arith.addf %65, %66 : vector<2x32xf32>
    %68 = math.tanh %67 : vector<2x32xf32>
    %c6_41 = arith.constant 6 : index
    %c0_42 = arith.constant 0 : index
    %69 = vector.load %arg11[%c6_41, %c0_42] : memref<16x32xf32, #tpu.memory_space<vmem>>, vector<2x32xf32>
    tpu.vector_store %arg11[%c6_41, %c0_42], %68 {strides = array<i32>} : memref<16x32xf32, #tpu.memory_space<vmem>>, vector<2x32xf32>,
    %70 = vector.extract_strided_slice %51 {offsets = [8, 0], sizes = [2, 32], strides = [1, 1]} : vector<16x32xf32> to vector<2x32xf32>
    %cst_43 = arith.constant dense<0.000000e+00> : vector<2x32xf32>
    %71 = tpu.matmul %68, %47, %cst_43 {dimension_numbers = #tpu.dot_dimension_numbers<[1], [0], [0], [1], [0, 0, 1, 1], [], []>} : vector<2x32xf32>, vector<32x32xf32>, vector<2x32xf32> -> vector<2x32xf32>
    %72 = arith.addf %70, %71 : vector<2x32xf32>
    %73 = math.tanh %72 : vector<2x32xf32>
    %c8_44 = arith.constant 8 : index
    %c0_45 = arith.constant 0 : index
    %74 = vector.load %arg11[%c8_44, %c0_45] : memref<16x32xf32, #tpu.memory_space<vmem>>, vector<2x32xf32>
    tpu.vector_store %arg11[%c8_44, %c0_45], %73 {strides = array<i32>} : memref<16x32xf32, #tpu.memory_space<vmem>>, vector<2x32xf32>,
    %75 = vector.extract_strided_slice %51 {offsets = [10, 0], sizes = [2, 32], strides = [1, 1]} : vector<16x32xf32> to vector<2x32xf32>
    %cst_46 = arith.constant dense<0.000000e+00> : vector<2x32xf32>
    %76 = tpu.matmul %73, %47, %cst_46 {dimension_numbers = #tpu.dot_dimension_numbers<[1], [0], [0], [1], [0, 0, 1, 1], [], []>} : vector<2x32xf32>, vector<32x32xf32>, vector<2x32xf32> -> vector<2x32xf32>
    %77 = arith.addf %75, %76 : vector<2x32xf32>
    %78 = math.tanh %77 : vector<2x32xf32>
    %c10_47 = arith.constant 10 : index
    %c0_48 = arith.constant 0 : index
    %79 = vector.load %arg11[%c10_47, %c0_48] : memref<16x32xf32, #tpu.memory_space<vmem>>, vector<2x32xf32>
    tpu.vector_store %arg11[%c10_47, %c0_48], %78 {strides = array<i32>} : memref<16x32xf32, #tpu.memory_space<vmem>>, vector<2x32xf32>,
    %80 = vector.extract_strided_slice %51 {offsets = [12, 0], sizes = [2, 32], strides = [1, 1]} : vector<16x32xf32> to vector<2x32xf32>
    %cst_49 = arith.constant dense<0.000000e+00> : vector<2x32xf32>
    %81 = tpu.matmul %78, %47, %cst_49 {dimension_numbers = #tpu.dot_dimension_numbers<[1], [0], [0], [1], [0, 0, 1, 1], [], []>} : vector<2x32xf32>, vector<32x32xf32>, vector<2x32xf32> -> vector<2x32xf32>
    %82 = arith.addf %80, %81 : vector<2x32xf32>
    %83 = math.tanh %82 : vector<2x32xf32>
    %c12_50 = arith.constant 12 : index
    %c0_51 = arith.constant 0 : index
    %84 = vector.load %arg11[%c12_50, %c0_51] : memref<16x32xf32, #tpu.memory_space<vmem>>, vector<2x32xf32>
    tpu.vector_store %arg11[%c12_50, %c0_51], %83 {strides = array<i32>} : memref<16x32xf32, #tpu.memory_space<vmem>>, vector<2x32xf32>,
    %85 = vector.extract_strided_slice %51 {offsets = [14, 0], sizes = [2, 32], strides = [1, 1]} : vector<16x32xf32> to vector<2x32xf32>
    %cst_52 = arith.constant dense<0.000000e+00> : vector<2x32xf32>
    %86 = tpu.matmul %83, %47, %cst_52 {dimension_numbers = #tpu.dot_dimension_numbers<[1], [0], [0], [1], [0, 0, 1, 1], [], []>} : vector<2x32xf32>, vector<32x32xf32>, vector<2x32xf32> -> vector<2x32xf32>
    %87 = arith.addf %85, %86 : vector<2x32xf32>
    %88 = math.tanh %87 : vector<2x32xf32>
    %c14_53 = arith.constant 14 : index
    %c0_54 = arith.constant 0 : index
    %89 = vector.load %arg11[%c14_53, %c0_54] : memref<16x32xf32, #tpu.memory_space<vmem>>, vector<2x32xf32>
    tpu.vector_store %arg11[%c14_53, %c0_54], %88 {strides = array<i32>} : memref<16x32xf32, #tpu.memory_space<vmem>>, vector<2x32xf32>,
    %c0_55 = arith.constant 0 : index
    %c0_56 = arith.constant 0 : index
    %90 = vector.load %arg11[%c0_55, %c0_56] : memref<16x32xf32, #tpu.memory_space<vmem>>, vector<16x32xf32>
    %c0_57 = arith.constant 0 : index
    %c0_58 = arith.constant 0 : index
    %91 = vector.load %arg7[%c0_57, %c0_58] : memref<32x32xf32, #tpu.memory_space<vmem>>, vector<32x32xf32>
    %c0_59 = arith.constant 0 : index
    %c0_60 = arith.constant 0 : index
    %92 = vector.load %arg8[%c0_59, %c0_60] : memref<32x32xf32, #tpu.memory_space<vmem>>, vector<32x32xf32>
    %c0_61 = arith.constant 0 : index
    %c0_62 = arith.constant 0 : index
    %93 = vector.load %arg9[%c0_61, %c0_62] : memref<1x32xf32, #tpu.memory_space<vmem>>, vector<1x32xf32>
    %cst_63 = arith.constant dense<0.000000e+00> : vector<16x32xf32>
    %94 = tpu.matmul %90, %91, %cst_63 {dimension_numbers = #tpu.dot_dimension_numbers<[1], [0], [0], [1], [0, 0, 1, 1], [], []>} : vector<16x32xf32>, vector<32x32xf32>, vector<16x32xf32> -> vector<16x32xf32>
    %95 = vector.broadcast %93 : vector<1x32xf32> to vector<16x32xf32>
    %96 = arith.addf %94, %95 : vector<16x32xf32>
    %97 = vector.extract_strided_slice %96 {offsets = [0, 0], sizes = [2, 32], strides = [1, 1]} : vector<16x32xf32> to vector<2x32xf32>
    %98 = math.tanh %97 : vector<2x32xf32>
    %c0_64 = arith.constant 0 : index
    %c0_65 = arith.constant 0 : index
    %99 = vector.load %arg10[%c0_64, %c0_65] : memref<16x32xf32, #tpu.memory_space<vmem>>, vector<2x32xf32>
    tpu.vector_store %arg10[%c0_64, %c0_65], %98 {strides = array<i32>} : memref<16x32xf32, #tpu.memory_space<vmem>>, vector<2x32xf32>,
    %100 = vector.extract_strided_slice %96 {offsets = [2, 0], sizes = [2, 32], strides = [1, 1]} : vector<16x32xf32> to vector<2x32xf32>
    %cst_66 = arith.constant dense<0.000000e+00> : vector<2x32xf32>
    %101 = tpu.matmul %98, %92, %cst_66 {dimension_numbers = #tpu.dot_dimension_numbers<[1], [0], [0], [1], [0, 0, 1, 1], [], []>} : vector<2x32xf32>, vector<32x32xf32>, vector<2x32xf32> -> vector<2x32xf32>
    %102 = arith.addf %100, %101 : vector<2x32xf32>
    %103 = math.tanh %102 : vector<2x32xf32>
    %c2_67 = arith.constant 2 : index
    %c0_68 = arith.constant 0 : index
    %104 = vector.load %arg10[%c2_67, %c0_68] : memref<16x32xf32, #tpu.memory_space<vmem>>, vector<2x32xf32>
    tpu.vector_store %arg10[%c2_67, %c0_68], %103 {strides = array<i32>} : memref<16x32xf32, #tpu.memory_space<vmem>>, vector<2x32xf32>,
    %105 = vector.extract_strided_slice %96 {offsets = [4, 0], sizes = [2, 32], strides = [1, 1]} : vector<16x32xf32> to vector<2x32xf32>
    %cst_69 = arith.constant dense<0.000000e+00> : vector<2x32xf32>
    %106 = tpu.matmul %103, %92, %cst_69 {dimension_numbers = #tpu.dot_dimension_numbers<[1], [0], [0], [1], [0, 0, 1, 1], [], []>} : vector<2x32xf32>, vector<32x32xf32>, vector<2x32xf32> -> vector<2x32xf32>
    %107 = arith.addf %105, %106 : vector<2x32xf32>
    %108 = math.tanh %107 : vector<2x32xf32>
    %c4_70 = arith.constant 4 : index
    %c0_71 = arith.constant 0 : index
    %109 = vector.load %arg10[%c4_70, %c0_71] : memref<16x32xf32, #tpu.memory_space<vmem>>, vector<2x32xf32>
    tpu.vector_store %arg10[%c4_70, %c0_71], %108 {strides = array<i32>} : memref<16x32xf32, #tpu.memory_space<vmem>>, vector<2x32xf32>,
    %110 = vector.extract_strided_slice %96 {offsets = [6, 0], sizes = [2, 32], strides = [1, 1]} : vector<16x32xf32> to vector<2x32xf32>
    %cst_72 = arith.constant dense<0.000000e+00> : vector<2x32xf32>
    %111 = tpu.matmul %108, %92, %cst_72 {dimension_numbers = #tpu.dot_dimension_numbers<[1], [0], [0], [1], [0, 0, 1, 1], [], []>} : vector<2x32xf32>, vector<32x32xf32>, vector<2x32xf32> -> vector<2x32xf32>
    %112 = arith.addf %110, %111 : vector<2x32xf32>
    %113 = math.tanh %112 : vector<2x32xf32>
    %c6_73 = arith.constant 6 : index
    %c0_74 = arith.constant 0 : index
    %114 = vector.load %arg10[%c6_73, %c0_74] : memref<16x32xf32, #tpu.memory_space<vmem>>, vector<2x32xf32>
    tpu.vector_store %arg10[%c6_73, %c0_74], %113 {strides = array<i32>} : memref<16x32xf32, #tpu.memory_space<vmem>>, vector<2x32xf32>,
    %115 = vector.extract_strided_slice %96 {offsets = [8, 0], sizes = [2, 32], strides = [1, 1]} : vector<16x32xf32> to vector<2x32xf32>
    %cst_75 = arith.constant dense<0.000000e+00> : vector<2x32xf32>
    %116 = tpu.matmul %113, %92, %cst_75 {dimension_numbers = #tpu.dot_dimension_numbers<[1], [0], [0], [1], [0, 0, 1, 1], [], []>} : vector<2x32xf32>, vector<32x32xf32>, vector<2x32xf32> -> vector<2x32xf32>
    %117 = arith.addf %115, %116 : vector<2x32xf32>
    %118 = math.tanh %117 : vector<2x32xf32>
    %c8_76 = arith.constant 8 : index
    %c0_77 = arith.constant 0 : index
    %119 = vector.load %arg10[%c8_76, %c0_77] : memref<16x32xf32, #tpu.memory_space<vmem>>, vector<2x32xf32>
    tpu.vector_store %arg10[%c8_76, %c0_77], %118 {strides = array<i32>} : memref<16x32xf32, #tpu.memory_space<vmem>>, vector<2x32xf32>,
    %120 = vector.extract_strided_slice %96 {offsets = [10, 0], sizes = [2, 32], strides = [1, 1]} : vector<16x32xf32> to vector<2x32xf32>
    %cst_78 = arith.constant dense<0.000000e+00> : vector<2x32xf32>
    %121 = tpu.matmul %118, %92, %cst_78 {dimension_numbers = #tpu.dot_dimension_numbers<[1], [0], [0], [1], [0, 0, 1, 1], [], []>} : vector<2x32xf32>, vector<32x32xf32>, vector<2x32xf32> -> vector<2x32xf32>
    %122 = arith.addf %120, %121 : vector<2x32xf32>
    %123 = math.tanh %122 : vector<2x32xf32>
    %c10_79 = arith.constant 10 : index
    %c0_80 = arith.constant 0 : index
    %124 = vector.load %arg10[%c10_79, %c0_80] : memref<16x32xf32, #tpu.memory_space<vmem>>, vector<2x32xf32>
    tpu.vector_store %arg10[%c10_79, %c0_80], %123 {strides = array<i32>} : memref<16x32xf32, #tpu.memory_space<vmem>>, vector<2x32xf32>,
    %125 = vector.extract_strided_slice %96 {offsets = [12, 0], sizes = [2, 32], strides = [1, 1]} : vector<16x32xf32> to vector<2x32xf32>
    %cst_81 = arith.constant dense<0.000000e+00> : vector<2x32xf32>
    %126 = tpu.matmul %123, %92, %cst_81 {dimension_numbers = #tpu.dot_dimension_numbers<[1], [0], [0], [1], [0, 0, 1, 1], [], []>} : vector<2x32xf32>, vector<32x32xf32>, vector<2x32xf32> -> vector<2x32xf32>
    %127 = arith.addf %125, %126 : vector<2x32xf32>
    %128 = math.tanh %127 : vector<2x32xf32>
    %c12_82 = arith.constant 12 : index
    %c0_83 = arith.constant 0 : index
    %129 = vector.load %arg10[%c12_82, %c0_83] : memref<16x32xf32, #tpu.memory_space<vmem>>, vector<2x32xf32>
    tpu.vector_store %arg10[%c12_82, %c0_83], %128 {strides = array<i32>} : memref<16x32xf32, #tpu.memory_space<vmem>>, vector<2x32xf32>,
    %130 = vector.extract_strided_slice %96 {offsets = [14, 0], sizes = [2, 32], strides = [1, 1]} : vector<16x32xf32> to vector<2x32xf32>
    %cst_84 = arith.constant dense<0.000000e+00> : vector<2x32xf32>
    %131 = tpu.matmul %128, %92, %cst_84 {dimension_numbers = #tpu.dot_dimension_numbers<[1], [0], [0], [1], [0, 0, 1, 1], [], []>} : vector<2x32xf32>, vector<32x32xf32>, vector<2x32xf32> -> vector<2x32xf32>
    %132 = arith.addf %130, %131 : vector<2x32xf32>
    %133 = math.tanh %132 : vector<2x32xf32>
    %c14_85 = arith.constant 14 : index
    %c0_86 = arith.constant 0 : index
    %134 = vector.load %arg10[%c14_85, %c0_86] : memref<16x32xf32, #tpu.memory_space<vmem>>, vector<2x32xf32>
    tpu.vector_store %arg10[%c14_85, %c0_86], %133 {strides = array<i32>} : memref<16x32xf32, #tpu.memory_space<vmem>>, vector<2x32xf32>,
    return
  }
}

</mosaic_0001>

<llo_original>
// kernel: encoder_forward.1
$region0: #{encoder_forward.1}
  #allocation0 [shape = 'u32[]', space=smem, size = 0x4, offset = 0x4, fixed_abs, tag = 'smem constant byte address 0x4 - core index']
  #allocation1 [shape = 'u32[144,128]{1,0:T(1,128)}', space=vmem, size = 0x12000, scoped, tag = 'internal scratch']
  #allocation2 [shape = 'f32[16,32]{1,0:T(8,128)}', space=vmem, size = 0x2000, scoped, tag = 'scratch operand']
  %s0 = inlined_call_operand.vmem [shape: f32[16,16], index: 0, kind: input, shape index: {}]
  %s1 = inlined_call_operand.hbm [shape: f32[16,32], index: 1, kind: input, shape index: {}]
  %s2 = inlined_call_operand.vmem [shape: f32[32,32], index: 2, kind: input, shape index: {}]
  %s3 = inlined_call_operand.vmem [shape: f32[1,32], index: 3, kind: input, shape index: {}]
  %s4 = inlined_call_operand.hbm [shape: f32[32,32], index: 4, kind: input, shape index: {}]
  %s5 = inlined_call_operand.hbm [shape: f32[32,32], index: 5, kind: input, shape index: {}]
  %s6 = inlined_call_operand.vmem [shape: f32[1,32], index: 6, kind: input, shape index: {}]
  %s7 = inlined_call_operand.vmem [shape: f32[32,32], index: 7, kind: input, shape index: {}]
  %s8 = inlined_call_operand.hbm [shape: f32[32,32], index: 8, kind: input, shape index: {}]
  %s9 = inlined_call_operand.hbm [shape: f32[1,32], index: 9, kind: input, shape index: {}]
  %s10 = inlined_call_operand.vmem [shape: f32[16,32], index: 10, kind: output, shape index: {}]
  %s11 = sld [smem:[#allocation0]]
  $region70: #{encoder_forward.1} parent=0
    _
  %s13 = ssub.s32 1, %s11
  %s14 = scalar_select 0, %s13, %s11
  $region1: #{encoder_forward.1} parent=0
    #allocation3 [shape = 'u8[8192]{0}', space=vmem, size = 0x2000, scoped, tag = 'input window, operand 1, single buffered']
    #allocation4 [shape = 's32[1]{0}', space=sflag, size = 0x4, scoped, tag = 'scoped memory for encoder_forward.1']
    #allocation5 [shape = 'u8[16384]{0}', space=vmem, size = 0x4000, scoped, tag = 'input window, operand 4, single buffered']
    #allocation6 [shape = 's32[1]{0}', space=sflag, size = 0x4, scoped, tag = 'scoped memory for encoder_forward.1']
    #allocation7 [shape = 'u8[16384]{0}', space=vmem, size = 0x4000, scoped, tag = 'input window, operand 5, single buffered']
    #allocation8 [shape = 'u8[16384]{0}', space=vmem, size = 0x4000, scoped, tag = 'input window, operand 8, single buffered']
    #allocation9 [shape = 's32[1]{0}', space=sflag, size = 0x4, scoped, tag = 'scoped memory for encoder_forward.1']
    #allocation10 [shape = 'u8[512]{0}', space=vmem, size = 0x400, scoped, tag = 'input window, operand 9, single buffered']
    %15 = vsyncpa [#allocation4], 0
    %16 = vsyncpa [#allocation6], 0
    %17 = vsyncpa [#allocation9], 0
    // Predicated region
    $region2: #{encoder_forward.1} parent=1 // pred_check
      _
    $region3: #{encoder_forward.1} parent=1 // pred_check_branch
      %19 = sbr.rel (0) target = $region5
    $region4: #{encoder_forward.1} parent=1 // pred_region
      _
    $region5: #{encoder_forward.1} parent=1 // pred_fallthru
      _
    // Predicated region
    $region6: #{encoder_forward.1} parent=1 // pred_check
      _
    $region7: #{encoder_forward.1} parent=1 // pred_check_branch
      %21 = sbr.rel (0) target = $region9
    $region8: #{encoder_forward.1} parent=1 // pred_region
      %s23 = ssub.s32 256, 256
      %24 = vsyncadd [#allocation4], %s23
      %s25 = sshll.u32 [#allocation3], 4
      %s26 = int_to_ptr.vmem [resolvable:$true] %s25
      %31 = dma.hbm_to_vmem [thread:$0]  %s1, 256, %s26, [#allocation4], 128, 128, 8
    $region9: #{encoder_forward.1} parent=1 // pred_fallthru
      _
    // Predicated region
    $region10: #{encoder_forward.1} parent=1 // pred_check
      _
    $region11: #{encoder_forward.1} parent=1 // pred_check_branch
      %33 = sbr.rel (0) target = $region13
    $region12: #{encoder_forward.1} parent=1 // pred_region
      _
    $region13: #{encoder_forward.1} parent=1 // pred_fallthru
      _
    // Predicated region
    $region14: #{encoder_forward.1} parent=1 // pred_check
      _
    $region15: #{encoder_forward.1} parent=1 // pred_check_branch
      %35 = sbr.rel (0) target = $region17
    $region16: #{encoder_forward.1} parent=1 // pred_region
      _
    $region17: #{encoder_forward.1} parent=1 // pred_fallthru
      _
    // Predicated region
    $region18: #{encoder_forward.1} parent=1 // pred_check
      _
    $region19: #{encoder_forward.1} parent=1 // pred_check_branch
      %37 = sbr.rel (0) target = $region21
    $region20: #{encoder_forward.1} parent=1 // pred_region
      %s39 = ssub.s32 512, 512
      %40 = vsyncadd [#allocation6], %s39
      %s41 = sshll.u32 [#allocation5], 4
      %s42 = int_to_ptr.vmem [resolvable:$true] %s41
      %47 = dma.hbm_to_vmem [thread:$0]  %s4, 512, %s42, [#allocation6], 128, 128, 8
    $region21: #{encoder_forward.1} parent=1 // pred_fallthru
      _
    // Predicated region
    $region22: #{encoder_forward.1} parent=1 // pred_check
      _
    $region23: #{encoder_forward.1} parent=1 // pred_check_branch
      %49 = sbr.rel (0) target = $region25
    $region24: #{encoder_forward.1} parent=1 // pred_region
      %s51 = ssub.s32 512, 512
      %52 = vsyncadd [#allocation6], %s51
      %s53 = sshll.u32 [#allocation7], 4
      %s54 = int_to_ptr.vmem [resolvable:$true] %s53
      %59 = dma.hbm_to_vmem [thread:$0]  %s5, 512, %s54, [#allocation6], 128, 128, 8
    $region25: #{encoder_forward.1} parent=1 // pred_fallthru
      _
    // Predicated region
    $region26: #{encoder_forward.1} parent=1 // pred_check
      _
    $region27: #{encoder_forward.1} parent=1 // pred_check_branch
      %61 = sbr.rel (0) target = $region29
    $region28: #{encoder_forward.1} parent=1 // pred_region
      _
    $region29: #{encoder_forward.1} parent=1 // pred_fallthru
      _
    // Predicated region
    $region30: #{encoder_forward.1} parent=1 // pred_check
      _
    $region31: #{encoder_forward.1} parent=1 // pred_check_branch
      %63 = sbr.rel (0) target = $region33
    $region32: #{encoder_forward.1} parent=1 // pred_region
      _
    $region33: #{encoder_forward.1} parent=1 // pred_fallthru
      _
    // Predicated region
    $region34: #{encoder_forward.1} parent=1 // pred_check
      _
    $region35: #{encoder_forward.1} parent=1 // pred_check_branch
      %65 = sbr.rel (0) target = $region37
    $region36: #{encoder_forward.1} parent=1 // pred_region
      %s67 = ssub.s32 512, 512
      %68 = vsyncadd [#allocation9], %s67
      %s69 = sshll.u32 [#allocation8], 4
      %s70 = int_to_ptr.vmem [resolvable:$true] %s69
      %75 = dma.hbm_to_vmem [thread:$0]  %s8, 512, %s70, [#allocation9], 128, 128, 8
    $region37: #{encoder_forward.1} parent=1 // pred_fallthru
      _
    // Predicated region
    $region38: #{encoder_forward.1} parent=1 // pred_check
      _
    $region39: #{encoder_forward.1} parent=1 // pred_check_branch
      %77 = sbr.rel (0) target = $region41
    $region40: #{encoder_forward.1} parent=1 // pred_region
      %s79 = ssub.s32 16, 16
      %80 = vsyncadd [#allocation9], %s79
      %s82 = sshll.u32 [#allocation10], 4
      %s83 = int_to_ptr.vmem [resolvable:$true] %s82
      %85 = dma.hbm_to_vmem [thread:$0]  %s9, 16, %s83, [#allocation9]
    $region41: #{encoder_forward.1} parent=1 // pred_fallthru
      _
    // Predicated region
    $region42: #{encoder_forward.1} parent=1 // pred_check
      _
    $region43: #{encoder_forward.1} parent=1 // pred_check_branch
      %87 = sbr.rel (0) target = $region45
    $region44: #{encoder_forward.1} parent=1 // pred_region
      %88 = dma.done [#allocation4], 256
    $region45: #{encoder_forward.1} parent=1 // pred_fallthru
      _
    // Predicated region
    $region46: #{encoder_forward.1} parent=1 // pred_check
      _
    $region47: #{encoder_forward.1} parent=1 // pred_check_branch
      %90 = sbr.rel (0) target = $region49
    $region48: #{encoder_forward.1} parent=1 // pred_region
      %91 = dma.done [#allocation6], 512
    $region49: #{encoder_forward.1} parent=1 // pred_fallthru
      _
    // Predicated region
    $region50: #{encoder_forward.1} parent=1 // pred_check
      _
    $region51: #{encoder_forward.1} parent=1 // pred_check_branch
      %93 = sbr.rel (0) target = $region53
    $region52: #{encoder_forward.1} parent=1 // pred_region
      %94 = dma.done [#allocation6], 512
    $region53: #{encoder_forward.1} parent=1 // pred_fallthru
      _
    // Predicated region
    $region54: #{encoder_forward.1} parent=1 // pred_check
      _
    $region55: #{encoder_forward.1} parent=1 // pred_check_branch
      %96 = sbr.rel (0) target = $region57
    $region56: #{encoder_forward.1} parent=1 // pred_region
      %97 = dma.done [#allocation9], 512
    $region57: #{encoder_forward.1} parent=1 // pred_fallthru
      _
    // Predicated region
    $region58: #{encoder_forward.1} parent=1 // pred_check
      _
    $region59: #{encoder_forward.1} parent=1 // pred_check_branch
      %99 = sbr.rel (0) target = $region61
    $region60: #{encoder_forward.1} parent=1 // pred_region
      %100 = dma.done [#allocation9], 16
    $region61: #{encoder_forward.1} parent=1 // pred_fallthru
      _
    %v101 = vld [vmem:[%s0] sm:$0xff]
    %v102 = vld [vmem:[%s0 + $0x8] sm:$0xff]
    %v103 = vld [vmem:[#allocation3] sm:$0xff]
    %v104 = vld [vmem:[#allocation3 + $0x8] sm:$0xff]
    %v105 = vld [vmem:[%s2] sm:$0xff]
    %v106 = vld [vmem:[%s2 + $0x8] sm:$0xff]
    %v107 = vld [vmem:[%s2 + $0x10] sm:$0xff]
    %v108 = vld [vmem:[%s2 + $0x18] sm:$0xff]
    %v109 = vld [vmem:[%s3] sm:$0x1]
    %v111 = vlaneseq
    %v112 = vshrl.u32 %v111, 7
    %v113 = vsub.s32 0, %v112
    %v114 = vrot.slane %v109, %v113
    %vm116 = vcmask 130048
    %v118 = vsel %vm116, %v101, 0
    %v121 = vsel %vm116, %v102, 0
    %123 = vmatprep.subr.mxu0 0.0
    %124 = vmatpush1.msra.mxu0 %v103
    %125 = vmatprep.subr.mxu0 0.0
    %126 = vmatpush1.msra.mxu0 %v104
    %127 = vmatprep.subr.mxu0 0.0
    %128 = vmatpush1.msra.mxu0 0.0
    %129 = vmatprep.subr.mxu0 0.0
    %130 = vmatpush1.msra.mxu0 0.0
    %131 = vmatprep.subr.mxu0 0.0
    %132 = vmatpush1.msra.mxu0 0.0
    %133 = vmatprep.subr.mxu0 0.0
    %134 = vmatpush1.msra.mxu0 0.0
    %135 = vmatprep.subr.mxu0 0.0
    %136 = vmatpush1.msra.mxu0 0.0
    %137 = vmatprep.subr.mxu0 0.0
    %138 = vmatpush1.msra.mxu0 0.0
    %139 = vmatprep.subr.mxu0 0.0
    %140 = vmatpush1.msra.mxu0 0.0
    %141 = vmatprep.subr.mxu0 0.0
    %142 = vmatpush1.msra.mxu0 0.0
    %143 = vmatprep.subr.mxu0 0.0
    %144 = vmatpush1.msra.mxu0 0.0
    %145 = vmatprep.subr.mxu0 0.0
    %146 = vmatpush1.msra.mxu0 0.0
    %147 = vmatprep.subr.mxu0 0.0
    %148 = vmatpush1.msra.mxu0 0.0
    %149 = vmatprep.subr.mxu0 0.0
    %150 = vmatpush1.msra.mxu0 0.0
    %151 = vmatprep.subr.mxu0 0.0
    %152 = vmatpush1.msra.mxu0 0.0
    %153 = vmatprep.subr.mxu0 0.0
    %154 = vmatpush1.msra.mxu0 0.0
    %155 = vmatprep.subr.mxu0 0.0
    %156 = vmatpush1.msra.mxu0 0.0
    %157 = vmatprep.subr.mxu0 0.0
    %158 = vmatpush1.msra.mxu0 0.0
    %159 = vmatprep.subr.mxu0 0.0
    %160 = vmatpush1.msra.mxu0 0.0
    %161 = vmatprep.subr.mxu0 0.0
    %162 = vmatpush1.msra.mxu0 0.0
    %163 = vmatprep.subr.mxu0 0.0
    %164 = vmatpush1.msra.mxu0 0.0
    %165 = vmatprep.subr.mxu0 0.0
    %166 = vmatpush1.msra.mxu0 0.0
    %167 = vmatprep.subr.mxu0 0.0
    %168 = vmatpush1.msra.mxu0 0.0
    %169 = vmatprep.subr.mxu0 0.0
    %170 = vmatpush1.msra.mxu0 0.0
    %171 = vmatprep.subr.mxu0 0.0
    %172 = vmatpush1.msra.mxu0 0.0
    %173 = vmatprep.subr.mxu0 0.0
    %174 = vmatpush1.msra.mxu0 0.0
    %175 = vmatprep.subr.mxu0 0.0
    %176 = vmatpush1.msra.mxu0 0.0
    %177 = vmatprep.subr.mxu0 0.0
    %178 = vmatpush1.msra.mxu0 0.0
    %179 = vmatprep.subr.mxu0 0.0
    %180 = vmatpush1.msra.mxu0 0.0
    %181 = vmatprep.subr.mxu0 0.0
    %182 = vmatpush1.msra.mxu0 0.0
    %183 = vmatprep.subr.mxu0 0.0
    %184 = vmatpush1.msra.mxu0 0.0
    %185 = vmatprep.subr.mxu0 0.0
    %186 = vmatpush1.msra.mxu0 0.0
    %187 = vmatprep.mubr.f32.mxu0 0.0
    %188 = vmatmul.mubr.f32.gmra.mrb[0].mxu0 %v118
    %v189 = vpop.f32.mrb[0].mxu0
    %v190 = vadd.f32 %v114, %v189
    %v191 = vpop.f32.mrb[0].mxu0
    %192 = vmatprep.mubr.f32.mxu0 0.0
    %193 = vmatmul.mubr.f32.gmra.mrb[0].mxu0 %v121
    %v194 = vpop.f32.mrb[0].mxu0
    %v195 = vadd.f32 %v114, %v194
    %v196 = vpop.f32.mrb[0].mxu0
    %197 = vdwg.mxu0
    %v198 = vtanh.pop %v190
    %vm199 = vcmask 254976
    %200 = vst.msk [vmem:[#allocation2] sm:$0x3] %vm199, %v198
    %vm201 = vcmask 261120
    %v203 = vsel %vm201, %v198, 0
    %205 = vmatprep.subr.mxu0 0.0
    %206 = vmatpush1.msra.mxu0 %v105
    %207 = vmatprep.subr.mxu0 0.0
    %208 = vmatpush1.msra.mxu0 %v106
    %209 = vmatprep.subr.mxu0 0.0
    %210 = vmatpush1.msra.mxu0 %v107
    %211 = vmatprep.subr.mxu0 0.0
    %212 = vmatpush1.msra.mxu0 %v108
    %213 = vmatprep.subr.mxu0 0.0
    %214 = vmatpush1.msra.mxu0 0.0
    %215 = vmatprep.subr.mxu0 0.0
    %216 = vmatpush1.msra.mxu0 0.0
    %217 = vmatprep.subr.mxu0 0.0
    %218 = vmatpush1.msra.mxu0 0.0
    %219 = vmatprep.subr.mxu0 0.0
    %220 = vmatpush1.msra.mxu0 0.0
    %221 = vmatprep.subr.mxu0 0.0
    %222 = vmatpush1.msra.mxu0 0.0
    %223 = vmatprep.subr.mxu0 0.0
    %224 = vmatpush1.msra.mxu0 0.0
    %225 = vmatprep.subr.mxu0 0.0
    %226 = vmatpush1.msra.mxu0 0.0
    %227 = vmatprep.subr.mxu0 0.0
    %228 = vmatpush1.msra.mxu0 0.0
    %229 = vmatprep.subr.mxu0 0.0
    %230 = vmatpush1.msra.mxu0 0.0
    %231 = vmatprep.subr.mxu0 0.0
    %232 = vmatpush1.msra.mxu0 0.0
    %233 = vmatprep.subr.mxu0 0.0
    %234 = vmatpush1.msra.mxu0 0.0
    %235 = vmatprep.subr.mxu0 0.0
    %236 = vmatpush1.msra.mxu0 0.0
    %237 = vmatprep.subr.mxu0 0.0
    %238 = vmatpush1.msra.mxu0 0.0
    %239 = vmatprep.subr.mxu0 0.0
    %240 = vmatpush1.msra.mxu0 0.0
    %241 = vmatprep.subr.mxu0 0.0
    %242 = vmatpush1.msra.mxu0 0.0
    %243 = vmatprep.subr.mxu0 0.0
    %244 = vmatpush1.msra.mxu0 0.0
    %245 = vmatprep.subr.mxu0 0.0
    %246 = vmatpush1.msra.mxu0 0.0
    %247 = vmatprep.subr.mxu0 0.0
    %248 = vmatpush1.msra.mxu0 0.0
    %249 = vmatprep.subr.mxu0 0.0
    %250 = vmatpush1.msra.mxu0 0.0
    %251 = vmatprep.subr.mxu0 0.0
    %252 = vmatpush1.msra.mxu0 0.0
    %253 = vmatprep.subr.mxu0 0.0
    %254 = vmatpush1.msra.mxu0 0.0
    %255 = vmatprep.subr.mxu0 0.0
    %256 = vmatpush1.msra.mxu0 0.0
    %257 = vmatprep.subr.mxu0 0.0
    %258 = vmatpush1.msra.mxu0 0.0
    %259 = vmatprep.subr.mxu0 0.0
    %260 = vmatpush1.msra.mxu0 0.0
    %261 = vmatprep.subr.mxu0 0.0
    %262 = vmatpush1.msra.mxu0 0.0
    %263 = vmatprep.subr.mxu0 0.0
    %264 = vmatpush1.msra.mxu0 0.0
    %265 = vmatprep.subr.mxu0 0.0
    %266 = vmatpush1.msra.mxu0 0.0
    %267 = vmatprep.subr.mxu0 0.0
    %268 = vmatpush1.msra.mxu0 0.0
    %269 = vmatprep.mubr.f32.mxu0 0.0
    %270 = vmatmul.mubr.f32.gmra.mrb[0].mxu0 %v203
    %v271 = vpop.f32.mrb[0].mxu0
    %v272 = vadd.f32 0.0, %v271
    %v273 = vpop.f32.mrb[0].mxu0
    %274 = vdwg.mxu0
    %v276 = vrot.slane %v272, 6
    %v278 = vadd.f32 %v190, %v276
    %v279 = vtanh.pop %v278
    %vm280 = vcmask 257026
    %281 = vst.msk [vmem:[#allocation2] sm:$0xc] %vm280, %v279
    %v283 = vrot.slane %v279, 2
    %v284 = vsel %vm201, %v283, 0
    %286 = vmatprep.subr.mxu0 0.0
    %287 = vmatpush1.msra.mxu0 %v105
    %288 = vmatprep.subr.mxu0 0.0
    %289 = vmatpush1.msra.mxu0 %v106
    %290 = vmatprep.subr.mxu0 0.0
    %291 = vmatpush1.msra.mxu0 %v107
    %292 = vmatprep.subr.mxu0 0.0
    %293 = vmatpush1.msra.mxu0 %v108
    %294 = vmatprep.subr.mxu0 0.0
    %295 = vmatpush1.msra.mxu0 0.0
    %296 = vmatprep.subr.mxu0 0.0
    %297 = vmatpush1.msra.mxu0 0.0
    %298 = vmatprep.subr.mxu0 0.0
    %299 = vmatpush1.msra.mxu0 0.0
    %300 = vmatprep.subr.mxu0 0.0
    %301 = vmatpush1.msra.mxu0 0.0
    %302 = vmatprep.subr.mxu0 0.0
    %303 = vmatpush1.msra.mxu0 0.0
    %304 = vmatprep.subr.mxu0 0.0
    %305 = vmatpush1.msra.mxu0 0.0
    %306 = vmatprep.subr.mxu0 0.0
    %307 = vmatpush1.msra.mxu0 0.0
    %308 = vmatprep.subr.mxu0 0.0
    %309 = vmatpush1.msra.mxu0 0.0
    %310 = vmatprep.subr.mxu0 0.0
    %311 = vmatpush1.msra.mxu0 0.0
    %312 = vmatprep.subr.mxu0 0.0
    %313 = vmatpush1.msra.mxu0 0.0
    %314 = vmatprep.subr.mxu0 0.0
    %315 = vmatpush1.msra.mxu0 0.0
    %316 = vmatprep.subr.mxu0 0.0
    %317 = vmatpush1.msra.mxu0 0.0
    %318 = vmatprep.subr.mxu0 0.0
    %319 = vmatpush1.msra.mxu0 0.0
    %320 = vmatprep.subr.mxu0 0.0
    %321 = vmatpush1.msra.mxu0 0.0
    %322 = vmatprep.subr.mxu0 0.0
    %323 = vmatpush1.msra.mxu0 0.0
    %324 = vmatprep.subr.mxu0 0.0
    %325 = vmatpush1.msra.mxu0 0.0
    %326 = vmatprep.subr.mxu0 0.0
    %327 = vmatpush1.msra.mxu0 0.0
    %328 = vmatprep.subr.mxu0 0.0
    %329 = vmatpush1.msra.mxu0 0.0
    %330 = vmatprep.subr.mxu0 0.0
    %331 = vmatpush1.msra.mxu0 0.0
    %332 = vmatprep.subr.mxu0 0.0
    %333 = vmatpush1.msra.mxu0 0.0
    %334 = vmatprep.subr.mxu0 0.0
    %335 = vmatpush1.msra.mxu0 0.0
    %336 = vmatprep.subr.mxu0 0.0
    %337 = vmatpush1.msra.mxu0 0.0
    %338 = vmatprep.subr.mxu0 0.0
    %339 = vmatpush1.msra.mxu0 0.0
    %340 = vmatprep.subr.mxu0 0.0
    %341 = vmatpush1.msra.mxu0 0.0
    %342 = vmatprep.subr.mxu0 0.0
    %343 = vmatpush1.msra.mxu0 0.0
    %344 = vmatprep.subr.mxu0 0.0
    %345 = vmatpush1.msra.mxu0 0.0
    %346 = vmatprep.subr.mxu0 0.0
    %347 = vmatpush1.msra.mxu0 0.0
    %348 = vmatprep.subr.mxu0 0.0
    %349 = vmatpush1.msra.mxu0 0.0
    %350 = vmatprep.mubr.f32.mxu0 0.0
    %351 = vmatmul.mubr.f32.gmra.mrb[0].mxu0 %v284
    %v352 = vpop.f32.mrb[0].mxu0
    %v353 = vadd.f32 0.0, %v352
    %v354 = vpop.f32.mrb[0].mxu0
    %355 = vdwg.mxu0
    %v357 = vrot.slane %v353, 4
    %v359 = vadd.f32 %v190, %v357
    %v360 = vtanh.pop %v359
    %vm361 = vcmask 259076
    %362 = vst.msk [vmem:[#allocation2] sm:$0x30] %vm361, %v360
    %v364 = vrot.slane %v360, 4
    %v365 = vsel %vm201, %v364, 0
    %367 = vmatprep.subr.mxu0 0.0
    %368 = vmatpush1.msra.mxu0 %v105
    %369 = vmatprep.subr.mxu0 0.0
    %370 = vmatpush1.msra.mxu0 %v106
    %371 = vmatprep.subr.mxu0 0.0
    %372 = vmatpush1.msra.mxu0 %v107
    %373 = vmatprep.subr.mxu0 0.0
    %374 = vmatpush1.msra.mxu0 %v108
    %375 = vmatprep.subr.mxu0 0.0
    %376 = vmatpush1.msra.mxu0 0.0
    %377 = vmatprep.subr.mxu0 0.0
    %378 = vmatpush1.msra.mxu0 0.0
    %379 = vmatprep.subr.mxu0 0.0
    %380 = vmatpush1.msra.mxu0 0.0
    %381 = vmatprep.subr.mxu0 0.0
    %382 = vmatpush1.msra.mxu0 0.0
    %383 = vmatprep.subr.mxu0 0.0
    %384 = vmatpush1.msra.mxu0 0.0
    %385 = vmatprep.subr.mxu0 0.0
    %386 = vmatpush1.msra.mxu0 0.0
    %387 = vmatprep.subr.mxu0 0.0
    %388 = vmatpush1.msra.mxu0 0.0
    %389 = vmatprep.subr.mxu0 0.0
    %390 = vmatpush1.msra.mxu0 0.0
    %391 = vmatprep.subr.mxu0 0.0
    %392 = vmatpush1.msra.mxu0 0.0
    %393 = vmatprep.subr.mxu0 0.0
    %394 = vmatpush1.msra.mxu0 0.0
    %395 = vmatprep.subr.mxu0 0.0
    %396 = vmatpush1.msra.mxu0 0.0
    %397 = vmatprep.subr.mxu0 0.0
    %398 = vmatpush1.msra.mxu0 0.0
    %399 = vmatprep.subr.mxu0 0.0
    %400 = vmatpush1.msra.mxu0 0.0
    %401 = vmatprep.subr.mxu0 0.0
    %402 = vmatpush1.msra.mxu0 0.0
    %403 = vmatprep.subr.mxu0 0.0
    %404 = vmatpush1.msra.mxu0 0.0
    %405 = vmatprep.subr.mxu0 0.0
    %406 = vmatpush1.msra.mxu0 0.0
    %407 = vmatprep.subr.mxu0 0.0
    %408 = vmatpush1.msra.mxu0 0.0
    %409 = vmatprep.subr.mxu0 0.0
    %410 = vmatpush1.msra.mxu0 0.0
    %411 = vmatprep.subr.mxu0 0.0
    %412 = vmatpush1.msra.mxu0 0.0
    %413 = vmatprep.subr.mxu0 0.0
    %414 = vmatpush1.msra.mxu0 0.0
    %415 = vmatprep.subr.mxu0 0.0
    %416 = vmatpush1.msra.mxu0 0.0
    %417 = vmatprep.subr.mxu0 0.0
    %418 = vmatpush1.msra.mxu0 0.0
    %419 = vmatprep.subr.mxu0 0.0
    %420 = vmatpush1.msra.mxu0 0.0
    %421 = vmatprep.subr.mxu0 0.0
    %422 = vmatpush1.msra.mxu0 0.0
    %423 = vmatprep.subr.mxu0 0.0
    %424 = vmatpush1.msra.mxu0 0.0
    %425 = vmatprep.subr.mxu0 0.0
    %426 = vmatpush1.msra.mxu0 0.0
    %427 = vmatprep.subr.mxu0 0.0
    %428 = vmatpush1.msra.mxu0 0.0
    %429 = vmatprep.subr.mxu0 0.0
    %430 = vmatpush1.msra.mxu0 0.0
    %431 = vmatprep.mubr.f32.mxu0 0.0
    %432 = vmatmul.mubr.f32.gmra.mrb[0].mxu0 %v365
    %v433 = vpop.f32.mrb[0].mxu0
    %v434 = vadd.f32 0.0, %v433
    %v435 = vpop.f32.mrb[0].mxu0
    %436 = vdwg.mxu0
    %v438 = vrot.slane %v434, 2
    %v440 = vadd.f32 %v190, %v438
    %v441 = vtanh.pop %v440
    %vm442 = vcmask 261126
    %443 = vst.msk [vmem:[#allocation2] sm:$0xc0] %vm442, %v441
    %v445 = vrot.slane %v441, 6
    %v446 = vsel %vm201, %v445, 0
    %448 = vmatprep.subr.mxu0 0.0
    %449 = vmatpush1.msra.mxu0 %v105
    %450 = vmatprep.subr.mxu0 0.0
    %451 = vmatpush1.msra.mxu0 %v106
    %452 = vmatprep.subr.mxu0 0.0
    %453 = vmatpush1.msra.mxu0 %v107
    %454 = vmatprep.subr.mxu0 0.0
    %455 = vmatpush1.msra.mxu0 %v108
    %456 = vmatprep.subr.mxu0 0.0
    %457 = vmatpush1.msra.mxu0 0.0
    %458 = vmatprep.subr.mxu0 0.0
    %459 = vmatpush1.msra.mxu0 0.0
    %460 = vmatprep.subr.mxu0 0.0
    %461 = vmatpush1.msra.mxu0 0.0
    %462 = vmatprep.subr.mxu0 0.0
    %463 = vmatpush1.msra.mxu0 0.0
    %464 = vmatprep.subr.mxu0 0.0
    %465 = vmatpush1.msra.mxu0 0.0
    %466 = vmatprep.subr.mxu0 0.0
    %467 = vmatpush1.msra.mxu0 0.0
    %468 = vmatprep.subr.mxu0 0.0
    %469 = vmatpush1.msra.mxu0 0.0
    %470 = vmatprep.subr.mxu0 0.0
    %471 = vmatpush1.msra.mxu0 0.0
    %472 = vmatprep.subr.mxu0 0.0
    %473 = vmatpush1.msra.mxu0 0.0
    %474 = vmatprep.subr.mxu0 0.0
    %475 = vmatpush1.msra.mxu0 0.0
    %476 = vmatprep.subr.mxu0 0.0
    %477 = vmatpush1.msra.mxu0 0.0
    %478 = vmatprep.subr.mxu0 0.0
    %479 = vmatpush1.msra.mxu0 0.0
    %480 = vmatprep.subr.mxu0 0.0
    %481 = vmatpush1.msra.mxu0 0.0
    %482 = vmatprep.subr.mxu0 0.0
    %483 = vmatpush1.msra.mxu0 0.0
    %484 = vmatprep.subr.mxu0 0.0
    %485 = vmatpush1.msra.mxu0 0.0
    %486 = vmatprep.subr.mxu0 0.0
    %487 = vmatpush1.msra.mxu0 0.0
    %488 = vmatprep.subr.mxu0 0.0
    %489 = vmatpush1.msra.mxu0 0.0
    %490 = vmatprep.subr.mxu0 0.0
    %491 = vmatpush1.msra.mxu0 0.0
    %492 = vmatprep.subr.mxu0 0.0
    %493 = vmatpush1.msra.mxu0 0.0
    %494 = vmatprep.subr.mxu0 0.0
    %495 = vmatpush1.msra.mxu0 0.0
    %496 = vmatprep.subr.mxu0 0.0
    %497 = vmatpush1.msra.mxu0 0.0
    %498 = vmatprep.subr.mxu0 0.0
    %499 = vmatpush1.msra.mxu0 0.0
    %500 = vmatprep.subr.mxu0 0.0
    %501 = vmatpush1.msra.mxu0 0.0
    %502 = vmatprep.subr.mxu0 0.0
    %503 = vmatpush1.msra.mxu0 0.0
    %504 = vmatprep.subr.mxu0 0.0
    %505 = vmatpush1.msra.mxu0 0.0
    %506 = vmatprep.subr.mxu0 0.0
    %507 = vmatpush1.msra.mxu0 0.0
    %508 = vmatprep.subr.mxu0 0.0
    %509 = vmatpush1.msra.mxu0 0.0
    %510 = vmatprep.subr.mxu0 0.0
    %511 = vmatpush1.msra.mxu0 0.0
    %512 = vmatprep.mubr.f32.mxu0 0.0
    %513 = vmatmul.mubr.f32.gmra.mrb[0].mxu0 %v446
    %v514 = vpop.f32.mrb[0].mxu0
    %v515 = vadd.f32 0.0, %v514
    %v516 = vpop.f32.mrb[0].mxu0
    %517 = vdwg.mxu0
    %v518 = vadd.f32 %v195, %v515
    %v519 = vtanh.pop %v518
    %520 = vst.msk [vmem:[#allocation2 + $0x8] sm:$0x3] %vm199, %v519
    %v522 = vsel %vm201, %v519, 0
    %524 = vmatprep.subr.mxu0 0.0
    %525 = vmatpush1.msra.mxu0 %v105
    %526 = vmatprep.subr.mxu0 0.0
    %527 = vmatpush1.msra.mxu0 %v106
    %528 = vmatprep.subr.mxu0 0.0
    %529 = vmatpush1.msra.mxu0 %v107
    %530 = vmatprep.subr.mxu0 0.0
    %531 = vmatpush1.msra.mxu0 %v108
    %532 = vmatprep.subr.mxu0 0.0
    %533 = vmatpush1.msra.mxu0 0.0
    %534 = vmatprep.subr.mxu0 0.0
    %535 = vmatpush1.msra.mxu0 0.0
    %536 = vmatprep.subr.mxu0 0.0
    %537 = vmatpush1.msra.mxu0 0.0
    %538 = vmatprep.subr.mxu0 0.0
    %539 = vmatpush1.msra.mxu0 0.0
    %540 = vmatprep.subr.mxu0 0.0
    %541 = vmatpush1.msra.mxu0 0.0
    %542 = vmatprep.subr.mxu0 0.0
    %543 = vmatpush1.msra.mxu0 0.0
    %544 = vmatprep.subr.mxu0 0.0
    %545 = vmatpush1.msra.mxu0 0.0
    %546 = vmatprep.subr.mxu0 0.0
    %547 = vmatpush1.msra.mxu0 0.0
    %548 = vmatprep.subr.mxu0 0.0
    %549 = vmatpush1.msra.mxu0 0.0
    %550 = vmatprep.subr.mxu0 0.0
    %551 = vmatpush1.msra.mxu0 0.0
    %552 = vmatprep.subr.mxu0 0.0
    %553 = vmatpush1.msra.mxu0 0.0
    %554 = vmatprep.subr.mxu0 0.0
    %555 = vmatpush1.msra.mxu0 0.0
    %556 = vmatprep.subr.mxu0 0.0
    %557 = vmatpush1.msra.mxu0 0.0
    %558 = vmatprep.subr.mxu0 0.0
    %559 = vmatpush1.msra.mxu0 0.0
    %560 = vmatprep.subr.mxu0 0.0
    %561 = vmatpush1.msra.mxu0 0.0
    %562 = vmatprep.subr.mxu0 0.0
    %563 = vmatpush1.msra.mxu0 0.0
    %564 = vmatprep.subr.mxu0 0.0
    %565 = vmatpush1.msra.mxu0 0.0
    %566 = vmatprep.subr.mxu0 0.0
    %567 = vmatpush1.msra.mxu0 0.0
    %568 = vmatprep.subr.mxu0 0.0
    %569 = vmatpush1.msra.mxu0 0.0
    %570 = vmatprep.subr.mxu0 0.0
    %571 = vmatpush1.msra.mxu0 0.0
    %572 = vmatprep.subr.mxu0 0.0
    %573 = vmatpush1.msra.mxu0 0.0
    %574 = vmatprep.subr.mxu0 0.0
    %575 = vmatpush1.msra.mxu0 0.0
    %576 = vmatprep.subr.mxu0 0.0
    %577 = vmatpush1.msra.mxu0 0.0
    %578 = vmatprep.subr.mxu0 0.0
    %579 = vmatpush1.msra.mxu0 0.0
    %580 = vmatprep.subr.mxu0 0.0
    %581 = vmatpush1.msra.mxu0 0.0
    %582 = vmatprep.subr.mxu0 0.0
    %583 = vmatpush1.msra.mxu0 0.0
    %584 = vmatprep.subr.mxu0 0.0
    %585 = vmatpush1.msra.mxu0 0.0
    %586 = vmatprep.subr.mxu0 0.0
    %587 = vmatpush1.msra.mxu0 0.0
    %588 = vmatprep.mubr.f32.mxu0 0.0
    %589 = vmatmul.mubr.f32.gmra.mrb[0].mxu0 %v522
    %v590 = vpop.f32.mrb[0].mxu0
    %v591 = vadd.f32 0.0, %v590
    %v592 = vpop.f32.mrb[0].mxu0
    %593 = vdwg.mxu0
    %v595 = vrot.slane %v591, 6
    %v597 = vadd.f32 %v195, %v595
    %v598 = vtanh.pop %v597
    %599 = vst.msk [vmem:[#allocation2 + $0x8] sm:$0xc] %vm280, %v598
    %v601 = vrot.slane %v598, 2
    %v602 = vsel %vm201, %v601, 0
    %604 = vmatprep.subr.mxu0 0.0
    %605 = vmatpush1.msra.mxu0 %v105
    %606 = vmatprep.subr.mxu0 0.0
    %607 = vmatpush1.msra.mxu0 %v106
    %608 = vmatprep.subr.mxu0 0.0
    %609 = vmatpush1.msra.mxu0 %v107
    %610 = vmatprep.subr.mxu0 0.0
    %611 = vmatpush1.msra.mxu0 %v108
    %612 = vmatprep.subr.mxu0 0.0
    %613 = vmatpush1.msra.mxu0 0.0
    %614 = vmatprep.subr.mxu0 0.0
    %615 = vmatpush1.msra.mxu0 0.0
    %616 = vmatprep.subr.mxu0 0.0
    %617 = vmatpush1.msra.mxu0 0.0
    %618 = vmatprep.subr.mxu0 0.0
    %619 = vmatpush1.msra.mxu0 0.0
    %620 = vmatprep.subr.mxu0 0.0
    %621 = vmatpush1.msra.mxu0 0.0
    %622 = vmatprep.subr.mxu0 0.0
    %623 = vmatpush1.msra.mxu0 0.0
    %624 = vmatprep.subr.mxu0 0.0
    %625 = vmatpush1.msra.mxu0 0.0
    %626 = vmatprep.subr.mxu0 0.0
    %627 = vmatpush1.msra.mxu0 0.0
    %628 = vmatprep.subr.mxu0 0.0
    %629 = vmatpush1.msra.mxu0 0.0
    %630 = vmatprep.subr.mxu0 0.0
    %631 = vmatpush1.msra.mxu0 0.0
    %632 = vmatprep.subr.mxu0 0.0
    %633 = vmatpush1.msra.mxu0 0.0
    %634 = vmatprep.subr.mxu0 0.0
    %635 = vmatpush1.msra.mxu0 0.0
    %636 = vmatprep.subr.mxu0 0.0
    %637 = vmatpush1.msra.mxu0 0.0
    %638 = vmatprep.subr.mxu0 0.0
    %639 = vmatpush1.msra.mxu0 0.0
    %640 = vmatprep.subr.mxu0 0.0
    %641 = vmatpush1.msra.mxu0 0.0
    %642 = vmatprep.subr.mxu0 0.0
    %643 = vmatpush1.msra.mxu0 0.0
    %644 = vmatprep.subr.mxu0 0.0
    %645 = vmatpush1.msra.mxu0 0.0
    %646 = vmatprep.subr.mxu0 0.0
    %647 = vmatpush1.msra.mxu0 0.0
    %648 = vmatprep.subr.mxu0 0.0
    %649 = vmatpush1.msra.mxu0 0.0
    %650 = vmatprep.subr.mxu0 0.0
    %651 = vmatpush1.msra.mxu0 0.0
    %652 = vmatprep.subr.mxu0 0.0
    %653 = vmatpush1.msra.mxu0 0.0
    %654 = vmatprep.subr.mxu0 0.0
    %655 = vmatpush1.msra.mxu0 0.0
    %656 = vmatprep.subr.mxu0 0.0
    %657 = vmatpush1.msra.mxu0 0.0
    %658 = vmatprep.subr.mxu0 0.0
    %659 = vmatpush1.msra.mxu0 0.0
    %660 = vmatprep.subr.mxu0 0.0
    %661 = vmatpush1.msra.mxu0 0.0
    %662 = vmatprep.subr.mxu0 0.0
    %663 = vmatpush1.msra.mxu0 0.0
    %664 = vmatprep.subr.mxu0 0.0
    %665 = vmatpush1.msra.mxu0 0.0
    %666 = vmatprep.subr.mxu0 0.0
    %667 = vmatpush1.msra.mxu0 0.0
    %668 = vmatprep.mubr.f32.mxu0 0.0
    %669 = vmatmul.mubr.f32.gmra.mrb[0].mxu0 %v602
    %v670 = vpop.f32.mrb[0].mxu0
    %v671 = vadd.f32 0.0, %v670
    %v672 = vpop.f32.mrb[0].mxu0
    %673 = vdwg.mxu0
    %v675 = vrot.slane %v671, 4
    %v677 = vadd.f32 %v195, %v675
    %v678 = vtanh.pop %v677
    %679 = vst.msk [vmem:[#allocation2 + $0x8] sm:$0x30] %vm361, %v678
    %v681 = vrot.slane %v678, 4
    %v682 = vsel %vm201, %v681, 0
    %684 = vmatprep.subr.mxu0 0.0
    %685 = vmatpush1.msra.mxu0 %v105
    %686 = vmatprep.subr.mxu0 0.0
    %687 = vmatpush1.msra.mxu0 %v106
    %688 = vmatprep.subr.mxu0 0.0
    %689 = vmatpush1.msra.mxu0 %v107
    %690 = vmatprep.subr.mxu0 0.0
    %691 = vmatpush1.msra.mxu0 %v108
    %692 = vmatprep.subr.mxu0 0.0
    %693 = vmatpush1.msra.mxu0 0.0
    %694 = vmatprep.subr.mxu0 0.0
    %695 = vmatpush1.msra.mxu0 0.0
    %696 = vmatprep.subr.mxu0 0.0
    %697 = vmatpush1.msra.mxu0 0.0
    %698 = vmatprep.subr.mxu0 0.0
    %699 = vmatpush1.msra.mxu0 0.0
    %700 = vmatprep.subr.mxu0 0.0
    %701 = vmatpush1.msra.mxu0 0.0
    %702 = vmatprep.subr.mxu0 0.0
    %703 = vmatpush1.msra.mxu0 0.0
    %704 = vmatprep.subr.mxu0 0.0
    %705 = vmatpush1.msra.mxu0 0.0
    %706 = vmatprep.subr.mxu0 0.0
    %707 = vmatpush1.msra.mxu0 0.0
    %708 = vmatprep.subr.mxu0 0.0
    %709 = vmatpush1.msra.mxu0 0.0
    %710 = vmatprep.subr.mxu0 0.0
    %711 = vmatpush1.msra.mxu0 0.0
    %712 = vmatprep.subr.mxu0 0.0
    %713 = vmatpush1.msra.mxu0 0.0
    %714 = vmatprep.subr.mxu0 0.0
    %715 = vmatpush1.msra.mxu0 0.0
    %716 = vmatprep.subr.mxu0 0.0
    %717 = vmatpush1.msra.mxu0 0.0
    %718 = vmatprep.subr.mxu0 0.0
    %719 = vmatpush1.msra.mxu0 0.0
    %720 = vmatprep.subr.mxu0 0.0
    %721 = vmatpush1.msra.mxu0 0.0
    %722 = vmatprep.subr.mxu0 0.0
    %723 = vmatpush1.msra.mxu0 0.0
    %724 = vmatprep.subr.mxu0 0.0
    %725 = vmatpush1.msra.mxu0 0.0
    %726 = vmatprep.subr.mxu0 0.0
    %727 = vmatpush1.msra.mxu0 0.0
    %728 = vmatprep.subr.mxu0 0.0
    %729 = vmatpush1.msra.mxu0 0.0
    %730 = vmatprep.subr.mxu0 0.0
    %731 = vmatpush1.msra.mxu0 0.0
    %732 = vmatprep.subr.mxu0 0.0
    %733 = vmatpush1.msra.mxu0 0.0
    %734 = vmatprep.subr.mxu0 0.0
    %735 = vmatpush1.msra.mxu0 0.0
    %736 = vmatprep.subr.mxu0 0.0
    %737 = vmatpush1.msra.mxu0 0.0
    %738 = vmatprep.subr.mxu0 0.0
    %739 = vmatpush1.msra.mxu0 0.0
    %740 = vmatprep.subr.mxu0 0.0
    %741 = vmatpush1.msra.mxu0 0.0
    %742 = vmatprep.subr.mxu0 0.0
    %743 = vmatpush1.msra.mxu0 0.0
    %744 = vmatprep.subr.mxu0 0.0
    %745 = vmatpush1.msra.mxu0 0.0
    %746 = vmatprep.subr.mxu0 0.0
    %747 = vmatpush1.msra.mxu0 0.0
    %748 = vmatprep.mubr.f32.mxu0 0.0
    %749 = vmatmul.mubr.f32.gmra.mrb[0].mxu0 %v682
    %v750 = vpop.f32.mrb[0].mxu0
    %v751 = vadd.f32 0.0, %v750
    %v752 = vpop.f32.mrb[0].mxu0
    %753 = vdwg.mxu0
    %v755 = vrot.slane %v751, 2
    %v757 = vadd.f32 %v195, %v755
    %v758 = vtanh.pop %v757
    %759 = vst.msk [vmem:[#allocation2 + $0x8] sm:$0xc0] %vm442, %v758
    %v760 = vld [vmem:[#allocation2] sm:$0xff]
    %v761 = vld [vmem:[#allocation2 + $0x8] sm:$0xff]
    %v762 = vld [vmem:[#allocation5] sm:$0xff]
    %v763 = vld [vmem:[#allocation5 + $0x8] sm:$0xff]
    %v764 = vld [vmem:[#allocation5 + $0x10] sm:$0xff]
    %v765 = vld [vmem:[#allocation5 + $0x18] sm:$0xff]
    %v766 = vld [vmem:[#allocation7] sm:$0xff]
    %v767 = vld [vmem:[#allocation7 + $0x8] sm:$0xff]
    %v768 = vld [vmem:[#allocation7 + $0x10] sm:$0xff]
    %v769 = vld [vmem:[#allocation7 + $0x18] sm:$0xff]
    %v770 = vld [vmem:[%s6] sm:$0x1]
    %v772 = vlaneseq
    %v773 = vshrl.u32 %v772, 7
    %v774 = vsub.s32 0, %v773
    %v775 = vrot.slane %v770, %v774
    %v778 = vsel %vm201, %v760, 0
    %v781 = vsel %vm201, %v761, 0
    %783 = vmatprep.subr.mxu0 0.0
    %784 = vmatpush1.msra.mxu0 %v762
    %785 = vmatprep.subr.mxu0 0.0
    %786 = vmatpush1.msra.mxu0 %v763
    %787 = vmatprep.subr.mxu0 0.0
    %788 = vmatpush1.msra.mxu0 %v764
    %789 = vmatprep.subr.mxu0 0.0
    %790 = vmatpush1.msra.mxu0 %v765
    %791 = vmatprep.subr.mxu0 0.0
    %792 = vmatpush1.msra.mxu0 0.0
    %793 = vmatprep.subr.mxu0 0.0
    %794 = vmatpush1.msra.mxu0 0.0
    %795 = vmatprep.subr.mxu0 0.0
    %796 = vmatpush1.msra.mxu0 0.0
    %797 = vmatprep.subr.mxu0 0.0
    %798 = vmatpush1.msra.mxu0 0.0
    %799 = vmatprep.subr.mxu0 0.0
    %800 = vmatpush1.msra.mxu0 0.0
    %801 = vmatprep.subr.mxu0 0.0
    %802 = vmatpush1.msra.mxu0 0.0
    %803 = vmatprep.subr.mxu0 0.0
    %804 = vmatpush1.msra.mxu0 0.0
    %805 = vmatprep.subr.mxu0 0.0
    %806 = vmatpush1.msra.mxu0 0.0
    %807 = vmatprep.subr.mxu0 0.0
    %808 = vmatpush1.msra.mxu0 0.0
    %809 = vmatprep.subr.mxu0 0.0
    %810 = vmatpush1.msra.mxu0 0.0
    %811 = vmatprep.subr.mxu0 0.0
    %812 = vmatpush1.msra.mxu0 0.0
    %813 = vmatprep.subr.mxu0 0.0
    %814 = vmatpush1.msra.mxu0 0.0
    %815 = vmatprep.subr.mxu0 0.0
    %816 = vmatpush1.msra.mxu0 0.0
    %817 = vmatprep.subr.mxu0 0.0
    %818 = vmatpush1.msra.mxu0 0.0
    %819 = vmatprep.subr.mxu0 0.0
    %820 = vmatpush1.msra.mxu0 0.0
    %821 = vmatprep.subr.mxu0 0.0
    %822 = vmatpush1.msra.mxu0 0.0
    %823 = vmatprep.subr.mxu0 0.0
    %824 = vmatpush1.msra.mxu0 0.0
    %825 = vmatprep.subr.mxu0 0.0
    %826 = vmatpush1.msra.mxu0 0.0
    %827 = vmatprep.subr.mxu0 0.0
    %828 = vmatpush1.msra.mxu0 0.0
    %829 = vmatprep.subr.mxu0 0.0
    %830 = vmatpush1.msra.mxu0 0.0
    %831 = vmatprep.subr.mxu0 0.0
    %832 = vmatpush1.msra.mxu0 0.0
    %833 = vmatprep.subr.mxu0 0.0
    %834 = vmatpush1.msra.mxu0 0.0
    %835 = vmatprep.subr.mxu0 0.0
    %836 = vmatpush1.msra.mxu0 0.0
    %837 = vmatprep.subr.mxu0 0.0
    %838 = vmatpush1.msra.mxu0 0.0
    %839 = vmatprep.subr.mxu0 0.0
    %840 = vmatpush1.msra.mxu0 0.0
    %841 = vmatprep.subr.mxu0 0.0
    %842 = vmatpush1.msra.mxu0 0.0
    %843 = vmatprep.subr.mxu0 0.0
    %844 = vmatpush1.msra.mxu0 0.0
    %845 = vmatprep.subr.mxu0 0.0
    %846 = vmatpush1.msra.mxu0 0.0
    %847 = vmatprep.mubr.f32.mxu0 0.0
    %848 = vmatmul.mubr.f32.gmra.mrb[0].mxu0 %v778
    %v849 = vpop.f32.mrb[0].mxu0
    %v850 = vadd.f32 %v775, %v849
    %v851 = vpop.f32.mrb[0].mxu0
    %852 = vmatprep.mubr.f32.mxu0 0.0
    %853 = vmatmul.mubr.f32.gmra.mrb[0].mxu0 %v781
    %v854 = vpop.f32.mrb[0].mxu0
    %v855 = vadd.f32 %v775, %v854
    %v856 = vpop.f32.mrb[0].mxu0
    %857 = vdwg.mxu0
    %v858 = vtanh.pop %v850
    %859 = vst.msk [vmem:[#allocation2] sm:$0x3] %vm199, %v858
    %v861 = vsel %vm201, %v858, 0
    %863 = vmatprep.subr.mxu0 0.0
    %864 = vmatpush1.msra.mxu0 %v766
    %865 = vmatprep.subr.mxu0 0.0
    %866 = vmatpush1.msra.mxu0 %v767
    %867 = vmatprep.subr.mxu0 0.0
    %868 = vmatpush1.msra.mxu0 %v768
    %869 = vmatprep.subr.mxu0 0.0
    %870 = vmatpush1.msra.mxu0 %v769
    %871 = vmatprep.subr.mxu0 0.0
    %872 = vmatpush1.msra.mxu0 0.0
    %873 = vmatprep.subr.mxu0 0.0
    %874 = vmatpush1.msra.mxu0 0.0
    %875 = vmatprep.subr.mxu0 0.0
    %876 = vmatpush1.msra.mxu0 0.0
    %877 = vmatprep.subr.mxu0 0.0
    %878 = vmatpush1.msra.mxu0 0.0
    %879 = vmatprep.subr.mxu0 0.0
    %880 = vmatpush1.msra.mxu0 0.0
    %881 = vmatprep.subr.mxu0 0.0
    %882 = vmatpush1.msra.mxu0 0.0
    %883 = vmatprep.subr.mxu0 0.0
    %884 = vmatpush1.msra.mxu0 0.0
    %885 = vmatprep.subr.mxu0 0.0
    %886 = vmatpush1.msra.mxu0 0.0
    %887 = vmatprep.subr.mxu0 0.0
    %888 = vmatpush1.msra.mxu0 0.0
    %889 = vmatprep.subr.mxu0 0.0
    %890 = vmatpush1.msra.mxu0 0.0
    %891 = vmatprep.subr.mxu0 0.0
    %892 = vmatpush1.msra.mxu0 0.0
    %893 = vmatprep.subr.mxu0 0.0
    %894 = vmatpush1.msra.mxu0 0.0
    %895 = vmatprep.subr.mxu0 0.0
    %896 = vmatpush1.msra.mxu0 0.0
    %897 = vmatprep.subr.mxu0 0.0
    %898 = vmatpush1.msra.mxu0 0.0
    %899 = vmatprep.subr.mxu0 0.0
    %900 = vmatpush1.msra.mxu0 0.0
    %901 = vmatprep.subr.mxu0 0.0
    %902 = vmatpush1.msra.mxu0 0.0
    %903 = vmatprep.subr.mxu0 0.0
    %904 = vmatpush1.msra.mxu0 0.0
    %905 = vmatprep.subr.mxu0 0.0
    %906 = vmatpush1.msra.mxu0 0.0
    %907 = vmatprep.subr.mxu0 0.0
    %908 = vmatpush1.msra.mxu0 0.0
    %909 = vmatprep.subr.mxu0 0.0
    %910 = vmatpush1.msra.mxu0 0.0
    %911 = vmatprep.subr.mxu0 0.0
    %912 = vmatpush1.msra.mxu0 0.0
    %913 = vmatprep.subr.mxu0 0.0
    %914 = vmatpush1.msra.mxu0 0.0
    %915 = vmatprep.subr.mxu0 0.0
    %916 = vmatpush1.msra.mxu0 0.0
    %917 = vmatprep.subr.mxu0 0.0
    %918 = vmatpush1.msra.mxu0 0.0
    %919 = vmatprep.subr.mxu0 0.0
    %920 = vmatpush1.msra.mxu0 0.0
    %921 = vmatprep.subr.mxu0 0.0
    %922 = vmatpush1.msra.mxu0 0.0
    %923 = vmatprep.subr.mxu0 0.0
    %924 = vmatpush1.msra.mxu0 0.0
    %925 = vmatprep.subr.mxu0 0.0
    %926 = vmatpush1.msra.mxu0 0.0
    %927 = vmatprep.mubr.f32.mxu0 0.0
    %928 = vmatmul.mubr.f32.gmra.mrb[0].mxu0 %v861
    %v929 = vpop.f32.mrb[0].mxu0
    %v930 = vadd.f32 0.0, %v929
    %v931 = vpop.f32.mrb[0].mxu0
    %932 = vdwg.mxu0
    %v934 = vrot.slane %v930, 6
    %v936 = vadd.f32 %v850, %v934
    %v937 = vtanh.pop %v936
    %938 = vst.msk [vmem:[#allocation2] sm:$0xc] %vm280, %v937
    %v940 = vrot.slane %v937, 2
    %v941 = vsel %vm201, %v940, 0
    %943 = vmatprep.subr.mxu0 0.0
    %944 = vmatpush1.msra.mxu0 %v766
    %945 = vmatprep.subr.mxu0 0.0
    %946 = vmatpush1.msra.mxu0 %v767
    %947 = vmatprep.subr.mxu0 0.0
    %948 = vmatpush1.msra.mxu0 %v768
    %949 = vmatprep.subr.mxu0 0.0
    %950 = vmatpush1.msra.mxu0 %v769
    %951 = vmatprep.subr.mxu0 0.0
    %952 = vmatpush1.msra.mxu0 0.0
    %953 = vmatprep.subr.mxu0 0.0
    %954 = vmatpush1.msra.mxu0 0.0
    %955 = vmatprep.subr.mxu0 0.0
    %956 = vmatpush1.msra.mxu0 0.0
    %957 = vmatprep.subr.mxu0 0.0
    %958 = vmatpush1.msra.mxu0 0.0
    %959 = vmatprep.subr.mxu0 0.0
    %960 = vmatpush1.msra.mxu0 0.0
    %961 = vmatprep.subr.mxu0 0.0
    %962 = vmatpush1.msra.mxu0 0.0
    %963 = vmatprep.subr.mxu0 0.0
    %964 = vmatpush1.msra.mxu0 0.0
    %965 = vmatprep.subr.mxu0 0.0
    %966 = vmatpush1.msra.mxu0 0.0
    %967 = vmatprep.subr.mxu0 0.0
    %968 = vmatpush1.msra.mxu0 0.0
    %969 = vmatprep.subr.mxu0 0.0
    %970 = vmatpush1.msra.mxu0 0.0
    %971 = vmatprep.subr.mxu0 0.0
    %972 = vmatpush1.msra.mxu0 0.0
    %973 = vmatprep.subr.mxu0 0.0
    %974 = vmatpush1.msra.mxu0 0.0
    %975 = vmatprep.subr.mxu0 0.0
    %976 = vmatpush1.msra.mxu0 0.0
    %977 = vmatprep.subr.mxu0 0.0
    %978 = vmatpush1.msra.mxu0 0.0
    %979 = vmatprep.subr.mxu0 0.0
    %980 = vmatpush1.msra.mxu0 0.0
    %981 = vmatprep.subr.mxu0 0.0
    %982 = vmatpush1.msra.mxu0 0.0
    %983 = vmatprep.subr.mxu0 0.0
    %984 = vmatpush1.msra.mxu0 0.0
    %985 = vmatprep.subr.mxu0 0.0
    %986 = vmatpush1.msra.mxu0 0.0
    %987 = vmatprep.subr.mxu0 0.0
    %988 = vmatpush1.msra.mxu0 0.0
    %989 = vmatprep.subr.mxu0 0.0
    %990 = vmatpush1.msra.mxu0 0.0
    %991 = vmatprep.subr.mxu0 0.0
    %992 = vmatpush1.msra.mxu0 0.0
    %993 = vmatprep.subr.mxu0 0.0
    %994 = vmatpush1.msra.mxu0 0.0
    %995 = vmatprep.subr.mxu0 0.0
    %996 = vmatpush1.msra.mxu0 0.0
    %997 = vmatprep.subr.mxu0 0.0
    %998 = vmatpush1.msra.mxu0 0.0
    %999 = vmatprep.subr.mxu0 0.0
    %1000 = vmatpush1.msra.mxu0 0.0
    %1001 = vmatprep.subr.mxu0 0.0
    %1002 = vmatpush1.msra.mxu0 0.0
    %1003 = vmatprep.subr.mxu0 0.0
    %1004 = vmatpush1.msra.mxu0 0.0
    %1005 = vmatprep.subr.mxu0 0.0
    %1006 = vmatpush1.msra.mxu0 0.0
    %1007 = vmatprep.mubr.f32.mxu0 0.0
    %1008 = vmatmul.mubr.f32.gmra.mrb[0].mxu0 %v941
    %v1009 = vpop.f32.mrb[0].mxu0
    %v1010 = vadd.f32 0.0, %v1009
    %v1011 = vpop.f32.mrb[0].mxu0
    %1012 = vdwg.mxu0
    %v1014 = vrot.slane %v1010, 4
    %v1016 = vadd.f32 %v850, %v1014
    %v1017 = vtanh.pop %v1016
    %1018 = vst.msk [vmem:[#allocation2] sm:$0x30] %vm361, %v1017
    %v1020 = vrot.slane %v1017, 4
    %v1021 = vsel %vm201, %v1020, 0
    %1023 = vmatprep.subr.mxu0 0.0
    %1024 = vmatpush1.msra.mxu0 %v766
    %1025 = vmatprep.subr.mxu0 0.0
    %1026 = vmatpush1.msra.mxu0 %v767
    %1027 = vmatprep.subr.mxu0 0.0
    %1028 = vmatpush1.msra.mxu0 %v768
    %1029 = vmatprep.subr.mxu0 0.0
    %1030 = vmatpush1.msra.mxu0 %v769
    %1031 = vmatprep.subr.mxu0 0.0
    %1032 = vmatpush1.msra.mxu0 0.0
    %1033 = vmatprep.subr.mxu0 0.0
    %1034 = vmatpush1.msra.mxu0 0.0
    %1035 = vmatprep.subr.mxu0 0.0
    %1036 = vmatpush1.msra.mxu0 0.0
    %1037 = vmatprep.subr.mxu0 0.0
    %1038 = vmatpush1.msra.mxu0 0.0
    %1039 = vmatprep.subr.mxu0 0.0
    %1040 = vmatpush1.msra.mxu0 0.0
    %1041 = vmatprep.subr.mxu0 0.0
    %1042 = vmatpush1.msra.mxu0 0.0
    %1043 = vmatprep.subr.mxu0 0.0
    %1044 = vmatpush1.msra.mxu0 0.0
    %1045 = vmatprep.subr.mxu0 0.0
    %1046 = vmatpush1.msra.mxu0 0.0
    %1047 = vmatprep.subr.mxu0 0.0
    %1048 = vmatpush1.msra.mxu0 0.0
    %1049 = vmatprep.subr.mxu0 0.0
    %1050 = vmatpush1.msra.mxu0 0.0
    %1051 = vmatprep.subr.mxu0 0.0
    %1052 = vmatpush1.msra.mxu0 0.0
    %1053 = vmatprep.subr.mxu0 0.0
    %1054 = vmatpush1.msra.mxu0 0.0
    %1055 = vmatprep.subr.mxu0 0.0
    %1056 = vmatpush1.msra.mxu0 0.0
    %1057 = vmatprep.subr.mxu0 0.0
    %1058 = vmatpush1.msra.mxu0 0.0
    %1059 = vmatprep.subr.mxu0 0.0
    %1060 = vmatpush1.msra.mxu0 0.0
    %1061 = vmatprep.subr.mxu0 0.0
    %1062 = vmatpush1.msra.mxu0 0.0
    %1063 = vmatprep.subr.mxu0 0.0
    %1064 = vmatpush1.msra.mxu0 0.0
    %1065 = vmatprep.subr.mxu0 0.0
    %1066 = vmatpush1.msra.mxu0 0.0
    %1067 = vmatprep.subr.mxu0 0.0
    %1068 = vmatpush1.msra.mxu0 0.0
    %1069 = vmatprep.subr.mxu0 0.0
    %1070 = vmatpush1.msra.mxu0 0.0
    %1071 = vmatprep.subr.mxu0 0.0
    %1072 = vmatpush1.msra.mxu0 0.0
    %1073 = vmatprep.subr.mxu0 0.0
    %1074 = vmatpush1.msra.mxu0 0.0
    %1075 = vmatprep.subr.mxu0 0.0
    %1076 = vmatpush1.msra.mxu0 0.0
    %1077 = vmatprep.subr.mxu0 0.0
    %1078 = vmatpush1.msra.mxu0 0.0
    %1079 = vmatprep.subr.mxu0 0.0
    %1080 = vmatpush1.msra.mxu0 0.0
    %1081 = vmatprep.subr.mxu0 0.0
    %1082 = vmatpush1.msra.mxu0 0.0
    %1083 = vmatprep.subr.mxu0 0.0
    %1084 = vmatpush1.msra.mxu0 0.0
    %1085 = vmatprep.subr.mxu0 0.0
    %1086 = vmatpush1.msra.mxu0 0.0
    %1087 = vmatprep.mubr.f32.mxu0 0.0
    %1088 = vmatmul.mubr.f32.gmra.mrb[0].mxu0 %v1021
    %v1089 = vpop.f32.mrb[0].mxu0
    %v1090 = vadd.f32 0.0, %v1089
    %v1091 = vpop.f32.mrb[0].mxu0
    %1092 = vdwg.mxu0
    %v1094 = vrot.slane %v1090, 2
    %v1096 = vadd.f32 %v850, %v1094
    %v1097 = vtanh.pop %v1096
    %1098 = vst.msk [vmem:[#allocation2] sm:$0xc0] %vm442, %v1097
    %v1100 = vrot.slane %v1097, 6
    %v1101 = vsel %vm201, %v1100, 0
    %1103 = vmatprep.subr.mxu0 0.0
    %1104 = vmatpush1.msra.mxu0 %v766
    %1105 = vmatprep.subr.mxu0 0.0
    %1106 = vmatpush1.msra.mxu0 %v767
    %1107 = vmatprep.subr.mxu0 0.0
    %1108 = vmatpush1.msra.mxu0 %v768
    %1109 = vmatprep.subr.mxu0 0.0
    %1110 = vmatpush1.msra.mxu0 %v769
    %1111 = vmatprep.subr.mxu0 0.0
    %1112 = vmatpush1.msra.mxu0 0.0
    %1113 = vmatprep.subr.mxu0 0.0
    %1114 = vmatpush1.msra.mxu0 0.0
    %1115 = vmatprep.subr.mxu0 0.0
    %1116 = vmatpush1.msra.mxu0 0.0
    %1117 = vmatprep.subr.mxu0 0.0
    %1118 = vmatpush1.msra.mxu0 0.0
    %1119 = vmatprep.subr.mxu0 0.0
    %1120 = vmatpush1.msra.mxu0 0.0
    %1121 = vmatprep.subr.mxu0 0.0
    %1122 = vmatpush1.msra.mxu0 0.0
    %1123 = vmatprep.subr.mxu0 0.0
    %1124 = vmatpush1.msra.mxu0 0.0
    %1125 = vmatprep.subr.mxu0 0.0
    %1126 = vmatpush1.msra.mxu0 0.0
    %1127 = vmatprep.subr.mxu0 0.0
    %1128 = vmatpush1.msra.mxu0 0.0
    %1129 = vmatprep.subr.mxu0 0.0
    %1130 = vmatpush1.msra.mxu0 0.0
    %1131 = vmatprep.subr.mxu0 0.0
    %1132 = vmatpush1.msra.mxu0 0.0
    %1133 = vmatprep.subr.mxu0 0.0
    %1134 = vmatpush1.msra.mxu0 0.0
    %1135 = vmatprep.subr.mxu0 0.0
    %1136 = vmatpush1.msra.mxu0 0.0
    %1137 = vmatprep.subr.mxu0 0.0
    %1138 = vmatpush1.msra.mxu0 0.0
    %1139 = vmatprep.subr.mxu0 0.0
    %1140 = vmatpush1.msra.mxu0 0.0
    %1141 = vmatprep.subr.mxu0 0.0
    %1142 = vmatpush1.msra.mxu0 0.0
    %1143 = vmatprep.subr.mxu0 0.0
    %1144 = vmatpush1.msra.mxu0 0.0
    %1145 = vmatprep.subr.mxu0 0.0
    %1146 = vmatpush1.msra.mxu0 0.0
    %1147 = vmatprep.subr.mxu0 0.0
    %1148 = vmatpush1.msra.mxu0 0.0
    %1149 = vmatprep.subr.mxu0 0.0
    %1150 = vmatpush1.msra.mxu0 0.0
    %1151 = vmatprep.subr.mxu0 0.0
    %1152 = vmatpush1.msra.mxu0 0.0
    %1153 = vmatprep.subr.mxu0 0.0
    %1154 = vmatpush1.msra.mxu0 0.0
    %1155 = vmatprep.subr.mxu0 0.0
    %1156 = vmatpush1.msra.mxu0 0.0
    %1157 = vmatprep.subr.mxu0 0.0
    %1158 = vmatpush1.msra.mxu0 0.0
    %1159 = vmatprep.subr.mxu0 0.0
    %1160 = vmatpush1.msra.mxu0 0.0
    %1161 = vmatprep.subr.mxu0 0.0
    %1162 = vmatpush1.msra.mxu0 0.0
    %1163 = vmatprep.subr.mxu0 0.0
    %1164 = vmatpush1.msra.mxu0 0.0
    %1165 = vmatprep.subr.mxu0 0.0
    %1166 = vmatpush1.msra.mxu0 0.0
    %1167 = vmatprep.mubr.f32.mxu0 0.0
    %1168 = vmatmul.mubr.f32.gmra.mrb[0].mxu0 %v1101
    %v1169 = vpop.f32.mrb[0].mxu0
    %v1170 = vadd.f32 0.0, %v1169
    %v1171 = vpop.f32.mrb[0].mxu0
    %1172 = vdwg.mxu0
    %v1173 = vadd.f32 %v855, %v1170
    %v1174 = vtanh.pop %v1173
    %1175 = vst.msk [vmem:[#allocation2 + $0x8] sm:$0x3] %vm199, %v1174
    %v1177 = vsel %vm201, %v1174, 0
    %1179 = vmatprep.subr.mxu0 0.0
    %1180 = vmatpush1.msra.mxu0 %v766
    %1181 = vmatprep.subr.mxu0 0.0
    %1182 = vmatpush1.msra.mxu0 %v767
    %1183 = vmatprep.subr.mxu0 0.0
    %1184 = vmatpush1.msra.mxu0 %v768
    %1185 = vmatprep.subr.mxu0 0.0
    %1186 = vmatpush1.msra.mxu0 %v769
    %1187 = vmatprep.subr.mxu0 0.0
    %1188 = vmatpush1.msra.mxu0 0.0
    %1189 = vmatprep.subr.mxu0 0.0
    %1190 = vmatpush1.msra.mxu0 0.0
    %1191 = vmatprep.subr.mxu0 0.0
    %1192 = vmatpush1.msra.mxu0 0.0
    %1193 = vmatprep.subr.mxu0 0.0
    %1194 = vmatpush1.msra.mxu0 0.0
    %1195 = vmatprep.subr.mxu0 0.0
    %1196 = vmatpush1.msra.mxu0 0.0
    %1197 = vmatprep.subr.mxu0 0.0
    %1198 = vmatpush1.msra.mxu0 0.0
    %1199 = vmatprep.subr.mxu0 0.0
    %1200 = vmatpush1.msra.mxu0 0.0
    %1201 = vmatprep.subr.mxu0 0.0
    %1202 = vmatpush1.msra.mxu0 0.0
    %1203 = vmatprep.subr.mxu0 0.0
    %1204 = vmatpush1.msra.mxu0 0.0
    %1205 = vmatprep.subr.mxu0 0.0
    %1206 = vmatpush1.msra.mxu0 0.0
    %1207 = vmatprep.subr.mxu0 0.0
    %1208 = vmatpush1.msra.mxu0 0.0
    %1209 = vmatprep.subr.mxu0 0.0
    %1210 = vmatpush1.msra.mxu0 0.0
    %1211 = vmatprep.subr.mxu0 0.0
    %1212 = vmatpush1.msra.mxu0 0.0
    %1213 = vmatprep.subr.mxu0 0.0
    %1214 = vmatpush1.msra.mxu0 0.0
    %1215 = vmatprep.subr.mxu0 0.0
    %1216 = vmatpush1.msra.mxu0 0.0
    %1217 = vmatprep.subr.mxu0 0.0
    %1218 = vmatpush1.msra.mxu0 0.0
    %1219 = vmatprep.subr.mxu0 0.0
    %1220 = vmatpush1.msra.mxu0 0.0
    %1221 = vmatprep.subr.mxu0 0.0
    %1222 = vmatpush1.msra.mxu0 0.0
    %1223 = vmatprep.subr.mxu0 0.0
    %1224 = vmatpush1.msra.mxu0 0.0
    %1225 = vmatprep.subr.mxu0 0.0
    %1226 = vmatpush1.msra.mxu0 0.0
    %1227 = vmatprep.subr.mxu0 0.0
    %1228 = vmatpush1.msra.mxu0 0.0
    %1229 = vmatprep.subr.mxu0 0.0
    %1230 = vmatpush1.msra.mxu0 0.0
    %1231 = vmatprep.subr.mxu0 0.0
    %1232 = vmatpush1.msra.mxu0 0.0
    %1233 = vmatprep.subr.mxu0 0.0
    %1234 = vmatpush1.msra.mxu0 0.0
    %1235 = vmatprep.subr.mxu0 0.0
    %1236 = vmatpush1.msra.mxu0 0.0
    %1237 = vmatprep.subr.mxu0 0.0
    %1238 = vmatpush1.msra.mxu0 0.0
    %1239 = vmatprep.subr.mxu0 0.0
    %1240 = vmatpush1.msra.mxu0 0.0
    %1241 = vmatprep.subr.mxu0 0.0
    %1242 = vmatpush1.msra.mxu0 0.0
    %1243 = vmatprep.mubr.f32.mxu0 0.0
    %1244 = vmatmul.mubr.f32.gmra.mrb[0].mxu0 %v1177
    %v1245 = vpop.f32.mrb[0].mxu0
    %v1246 = vadd.f32 0.0, %v1245
    %v1247 = vpop.f32.mrb[0].mxu0
    %1248 = vdwg.mxu0
    %v1250 = vrot.slane %v1246, 6
    %v1252 = vadd.f32 %v855, %v1250
    %v1253 = vtanh.pop %v1252
    %1254 = vst.msk [vmem:[#allocation2 + $0x8] sm:$0xc] %vm280, %v1253
    %v1256 = vrot.slane %v1253, 2
    %v1257 = vsel %vm201, %v1256, 0
    %1259 = vmatprep.subr.mxu0 0.0
    %1260 = vmatpush1.msra.mxu0 %v766
    %1261 = vmatprep.subr.mxu0 0.0
    %1262 = vmatpush1.msra.mxu0 %v767
    %1263 = vmatprep.subr.mxu0 0.0
    %1264 = vmatpush1.msra.mxu0 %v768
    %1265 = vmatprep.subr.mxu0 0.0
    %1266 = vmatpush1.msra.mxu0 %v769
    %1267 = vmatprep.subr.mxu0 0.0
    %1268 = vmatpush1.msra.mxu0 0.0
    %1269 = vmatprep.subr.mxu0 0.0
    %1270 = vmatpush1.msra.mxu0 0.0
    %1271 = vmatprep.subr.mxu0 0.0
    %1272 = vmatpush1.msra.mxu0 0.0
    %1273 = vmatprep.subr.mxu0 0.0
    %1274 = vmatpush1.msra.mxu0 0.0
    %1275 = vmatprep.subr.mxu0 0.0
    %1276 = vmatpush1.msra.mxu0 0.0
    %1277 = vmatprep.subr.mxu0 0.0
    %1278 = vmatpush1.msra.mxu0 0.0
    %1279 = vmatprep.subr.mxu0 0.0
    %1280 = vmatpush1.msra.mxu0 0.0
    %1281 = vmatprep.subr.mxu0 0.0
    %1282 = vmatpush1.msra.mxu0 0.0
    %1283 = vmatprep.subr.mxu0 0.0
    %1284 = vmatpush1.msra.mxu0 0.0
    %1285 = vmatprep.subr.mxu0 0.0
    %1286 = vmatpush1.msra.mxu0 0.0
    %1287 = vmatprep.subr.mxu0 0.0
    %1288 = vmatpush1.msra.mxu0 0.0
    %1289 = vmatprep.subr.mxu0 0.0
    %1290 = vmatpush1.msra.mxu0 0.0
    %1291 = vmatprep.subr.mxu0 0.0
    %1292 = vmatpush1.msra.mxu0 0.0
    %1293 = vmatprep.subr.mxu0 0.0
    %1294 = vmatpush1.msra.mxu0 0.0
    %1295 = vmatprep.subr.mxu0 0.0
    %1296 = vmatpush1.msra.mxu0 0.0
    %1297 = vmatprep.subr.mxu0 0.0
    %1298 = vmatpush1.msra.mxu0 0.0
    %1299 = vmatprep.subr.mxu0 0.0
    %1300 = vmatpush1.msra.mxu0 0.0
    %1301 = vmatprep.subr.mxu0 0.0
    %1302 = vmatpush1.msra.mxu0 0.0
    %1303 = vmatprep.subr.mxu0 0.0
    %1304 = vmatpush1.msra.mxu0 0.0
    %1305 = vmatprep.subr.mxu0 0.0
    %1306 = vmatpush1.msra.mxu0 0.0
    %1307 = vmatprep.subr.mxu0 0.0
    %1308 = vmatpush1.msra.mxu0 0.0
    %1309 = vmatprep.subr.mxu0 0.0
    %1310 = vmatpush1.msra.mxu0 0.0
    %1311 = vmatprep.subr.mxu0 0.0
    %1312 = vmatpush1.msra.mxu0 0.0
    %1313 = vmatprep.subr.mxu0 0.0
    %1314 = vmatpush1.msra.mxu0 0.0
    %1315 = vmatprep.subr.mxu0 0.0
    %1316 = vmatpush1.msra.mxu0 0.0
    %1317 = vmatprep.subr.mxu0 0.0
    %1318 = vmatpush1.msra.mxu0 0.0
    %1319 = vmatprep.subr.mxu0 0.0
    %1320 = vmatpush1.msra.mxu0 0.0
    %1321 = vmatprep.subr.mxu0 0.0
    %1322 = vmatpush1.msra.mxu0 0.0
    %1323 = vmatprep.mubr.f32.mxu0 0.0
    %1324 = vmatmul.mubr.f32.gmra.mrb[0].mxu0 %v1257
    %v1325 = vpop.f32.mrb[0].mxu0
    %v1326 = vadd.f32 0.0, %v1325
    %v1327 = vpop.f32.mrb[0].mxu0
    %1328 = vdwg.mxu0
    %v1330 = vrot.slane %v1326, 4
    %v1332 = vadd.f32 %v855, %v1330
    %v1333 = vtanh.pop %v1332
    %1334 = vst.msk [vmem:[#allocation2 + $0x8] sm:$0x30] %vm361, %v1333
    %v1336 = vrot.slane %v1333, 4
    %v1337 = vsel %vm201, %v1336, 0
    %1339 = vmatprep.subr.mxu0 0.0
    %1340 = vmatpush1.msra.mxu0 %v766
    %1341 = vmatprep.subr.mxu0 0.0
    %1342 = vmatpush1.msra.mxu0 %v767
    %1343 = vmatprep.subr.mxu0 0.0
    %1344 = vmatpush1.msra.mxu0 %v768
    %1345 = vmatprep.subr.mxu0 0.0
    %1346 = vmatpush1.msra.mxu0 %v769
    %1347 = vmatprep.subr.mxu0 0.0
    %1348 = vmatpush1.msra.mxu0 0.0
    %1349 = vmatprep.subr.mxu0 0.0
    %1350 = vmatpush1.msra.mxu0 0.0
    %1351 = vmatprep.subr.mxu0 0.0
    %1352 = vmatpush1.msra.mxu0 0.0
    %1353 = vmatprep.subr.mxu0 0.0
    %1354 = vmatpush1.msra.mxu0 0.0
    %1355 = vmatprep.subr.mxu0 0.0
    %1356 = vmatpush1.msra.mxu0 0.0
    %1357 = vmatprep.subr.mxu0 0.0
    %1358 = vmatpush1.msra.mxu0 0.0
    %1359 = vmatprep.subr.mxu0 0.0
    %1360 = vmatpush1.msra.mxu0 0.0
    %1361 = vmatprep.subr.mxu0 0.0
    %1362 = vmatpush1.msra.mxu0 0.0
    %1363 = vmatprep.subr.mxu0 0.0
    %1364 = vmatpush1.msra.mxu0 0.0
    %1365 = vmatprep.subr.mxu0 0.0
    %1366 = vmatpush1.msra.mxu0 0.0
    %1367 = vmatprep.subr.mxu0 0.0
    %1368 = vmatpush1.msra.mxu0 0.0
    %1369 = vmatprep.subr.mxu0 0.0
    %1370 = vmatpush1.msra.mxu0 0.0
    %1371 = vmatprep.subr.mxu0 0.0
    %1372 = vmatpush1.msra.mxu0 0.0
    %1373 = vmatprep.subr.mxu0 0.0
    %1374 = vmatpush1.msra.mxu0 0.0
    %1375 = vmatprep.subr.mxu0 0.0
    %1376 = vmatpush1.msra.mxu0 0.0
    %1377 = vmatprep.subr.mxu0 0.0
    %1378 = vmatpush1.msra.mxu0 0.0
    %1379 = vmatprep.subr.mxu0 0.0
    %1380 = vmatpush1.msra.mxu0 0.0
    %1381 = vmatprep.subr.mxu0 0.0
    %1382 = vmatpush1.msra.mxu0 0.0
    %1383 = vmatprep.subr.mxu0 0.0
    %1384 = vmatpush1.msra.mxu0 0.0
    %1385 = vmatprep.subr.mxu0 0.0
    %1386 = vmatpush1.msra.mxu0 0.0
    %1387 = vmatprep.subr.mxu0 0.0
    %1388 = vmatpush1.msra.mxu0 0.0
    %1389 = vmatprep.subr.mxu0 0.0
    %1390 = vmatpush1.msra.mxu0 0.0
    %1391 = vmatprep.subr.mxu0 0.0
    %1392 = vmatpush1.msra.mxu0 0.0
    %1393 = vmatprep.subr.mxu0 0.0
    %1394 = vmatpush1.msra.mxu0 0.0
    %1395 = vmatprep.subr.mxu0 0.0
    %1396 = vmatpush1.msra.mxu0 0.0
    %1397 = vmatprep.subr.mxu0 0.0
    %1398 = vmatpush1.msra.mxu0 0.0
    %1399 = vmatprep.subr.mxu0 0.0
    %1400 = vmatpush1.msra.mxu0 0.0
    %1401 = vmatprep.subr.mxu0 0.0
    %1402 = vmatpush1.msra.mxu0 0.0
    %1403 = vmatprep.mubr.f32.mxu0 0.0
    %1404 = vmatmul.mubr.f32.gmra.mrb[0].mxu0 %v1337
    %v1405 = vpop.f32.mrb[0].mxu0
    %v1406 = vadd.f32 0.0, %v1405
    %v1407 = vpop.f32.mrb[0].mxu0
    %1408 = vdwg.mxu0
    %v1410 = vrot.slane %v1406, 2
    %v1412 = vadd.f32 %v855, %v1410
    %v1413 = vtanh.pop %v1412
    %1414 = vst.msk [vmem:[#allocation2 + $0x8] sm:$0xc0] %vm442, %v1413
    %v1415 = vld [vmem:[#allocation2] sm:$0xff]
    %v1416 = vld [vmem:[#allocation2 + $0x8] sm:$0xff]
    %v1417 = vld [vmem:[%s7] sm:$0xff]
    %v1418 = vld [vmem:[%s7 + $0x8] sm:$0xff]
    %v1419 = vld [vmem:[%s7 + $0x10] sm:$0xff]
    %v1420 = vld [vmem:[%s7 + $0x18] sm:$0xff]
    %v1421 = vld [vmem:[#allocation8] sm:$0xff]
    %v1422 = vld [vmem:[#allocation8 + $0x8] sm:$0xff]
    %v1423 = vld [vmem:[#allocation8 + $0x10] sm:$0xff]
    %v1424 = vld [vmem:[#allocation8 + $0x18] sm:$0xff]
    %v1425 = vld [vmem:[#allocation10] sm:$0x1]
    %v1427 = vlaneseq
    %v1428 = vshrl.u32 %v1427, 7
    %v1429 = vsub.s32 0, %v1428
    %v1430 = vrot.slane %v1425, %v1429
    %v1433 = vsel %vm201, %v1415, 0
    %v1436 = vsel %vm201, %v1416, 0
    %1438 = vmatprep.subr.mxu0 0.0
    %1439 = vmatpush1.msra.mxu0 %v1417
    %1440 = vmatprep.subr.mxu0 0.0
    %1441 = vmatpush1.msra.mxu0 %v1418
    %1442 = vmatprep.subr.mxu0 0.0
    %1443 = vmatpush1.msra.mxu0 %v1419
    %1444 = vmatprep.subr.mxu0 0.0
    %1445 = vmatpush1.msra.mxu0 %v1420
    %1446 = vmatprep.subr.mxu0 0.0
    %1447 = vmatpush1.msra.mxu0 0.0
    %1448 = vmatprep.subr.mxu0 0.0
    %1449 = vmatpush1.msra.mxu0 0.0
    %1450 = vmatprep.subr.mxu0 0.0
    %1451 = vmatpush1.msra.mxu0 0.0
    %1452 = vmatprep.subr.mxu0 0.0
    %1453 = vmatpush1.msra.mxu0 0.0
    %1454 = vmatprep.subr.mxu0 0.0
    %1455 = vmatpush1.msra.mxu0 0.0
    %1456 = vmatprep.subr.mxu0 0.0
    %1457 = vmatpush1.msra.mxu0 0.0
    %1458 = vmatprep.subr.mxu0 0.0
    %1459 = vmatpush1.msra.mxu0 0.0
    %1460 = vmatprep.subr.mxu0 0.0
    %1461 = vmatpush1.msra.mxu0 0.0
    %1462 = vmatprep.subr.mxu0 0.0
    %1463 = vmatpush1.msra.mxu0 0.0
    %1464 = vmatprep.subr.mxu0 0.0
    %1465 = vmatpush1.msra.mxu0 0.0
    %1466 = vmatprep.subr.mxu0 0.0
    %1467 = vmatpush1.msra.mxu0 0.0
    %1468 = vmatprep.subr.mxu0 0.0
    %1469 = vmatpush1.msra.mxu0 0.0
    %1470 = vmatprep.subr.mxu0 0.0
    %1471 = vmatpush1.msra.mxu0 0.0
    %1472 = vmatprep.subr.mxu0 0.0
    %1473 = vmatpush1.msra.mxu0 0.0
    %1474 = vmatprep.subr.mxu0 0.0
    %1475 = vmatpush1.msra.mxu0 0.0
    %1476 = vmatprep.subr.mxu0 0.0
    %1477 = vmatpush1.msra.mxu0 0.0
    %1478 = vmatprep.subr.mxu0 0.0
    %1479 = vmatpush1.msra.mxu0 0.0
    %1480 = vmatprep.subr.mxu0 0.0
    %1481 = vmatpush1.msra.mxu0 0.0
    %1482 = vmatprep.subr.mxu0 0.0
    %1483 = vmatpush1.msra.mxu0 0.0
    %1484 = vmatprep.subr.mxu0 0.0
    %1485 = vmatpush1.msra.mxu0 0.0
    %1486 = vmatprep.subr.mxu0 0.0
    %1487 = vmatpush1.msra.mxu0 0.0
    %1488 = vmatprep.subr.mxu0 0.0
    %1489 = vmatpush1.msra.mxu0 0.0
    %1490 = vmatprep.subr.mxu0 0.0
    %1491 = vmatpush1.msra.mxu0 0.0
    %1492 = vmatprep.subr.mxu0 0.0
    %1493 = vmatpush1.msra.mxu0 0.0
    %1494 = vmatprep.subr.mxu0 0.0
    %1495 = vmatpush1.msra.mxu0 0.0
    %1496 = vmatprep.subr.mxu0 0.0
    %1497 = vmatpush1.msra.mxu0 0.0
    %1498 = vmatprep.subr.mxu0 0.0
    %1499 = vmatpush1.msra.mxu0 0.0
    %1500 = vmatprep.subr.mxu0 0.0
    %1501 = vmatpush1.msra.mxu0 0.0
    %1502 = vmatprep.mubr.f32.mxu0 0.0
    %1503 = vmatmul.mubr.f32.gmra.mrb[0].mxu0 %v1433
    %v1504 = vpop.f32.mrb[0].mxu0
    %v1505 = vadd.f32 %v1430, %v1504
    %v1506 = vpop.f32.mrb[0].mxu0
    %1507 = vmatprep.mubr.f32.mxu0 0.0
    %1508 = vmatmul.mubr.f32.gmra.mrb[0].mxu0 %v1436
    %v1509 = vpop.f32.mrb[0].mxu0
    %v1510 = vadd.f32 %v1430, %v1509
    %v1511 = vpop.f32.mrb[0].mxu0
    %1512 = vdwg.mxu0
    %v1513 = vtanh.pop %v1505
    %1514 = vst.msk [vmem:[%s10] sm:$0x3] %vm199, %v1513
    %v1516 = vsel %vm201, %v1513, 0
    %1518 = vmatprep.subr.mxu0 0.0
    %1519 = vmatpush1.msra.mxu0 %v1421
    %1520 = vmatprep.subr.mxu0 0.0
    %1521 = vmatpush1.msra.mxu0 %v1422
    %1522 = vmatprep.subr.mxu0 0.0
    %1523 = vmatpush1.msra.mxu0 %v1423
    %1524 = vmatprep.subr.mxu0 0.0
    %1525 = vmatpush1.msra.mxu0 %v1424
    %1526 = vmatprep.subr.mxu0 0.0
    %1527 = vmatpush1.msra.mxu0 0.0
    %1528 = vmatprep.subr.mxu0 0.0
    %1529 = vmatpush1.msra.mxu0 0.0
    %1530 = vmatprep.subr.mxu0 0.0
    %1531 = vmatpush1.msra.mxu0 0.0
    %1532 = vmatprep.subr.mxu0 0.0
    %1533 = vmatpush1.msra.mxu0 0.0
    %1534 = vmatprep.subr.mxu0 0.0
    %1535 = vmatpush1.msra.mxu0 0.0
    %1536 = vmatprep.subr.mxu0 0.0
    %1537 = vmatpush1.msra.mxu0 0.0
    %1538 = vmatprep.subr.mxu0 0.0
    %1539 = vmatpush1.msra.mxu0 0.0
    %1540 = vmatprep.subr.mxu0 0.0
    %1541 = vmatpush1.msra.mxu0 0.0
    %1542 = vmatprep.subr.mxu0 0.0
    %1543 = vmatpush1.msra.mxu0 0.0
    %1544 = vmatprep.subr.mxu0 0.0
    %1545 = vmatpush1.msra.mxu0 0.0
    %1546 = vmatprep.subr.mxu0 0.0
    %1547 = vmatpush1.msra.mxu0 0.0
    %1548 = vmatprep.subr.mxu0 0.0
    %1549 = vmatpush1.msra.mxu0 0.0
    %1550 = vmatprep.subr.mxu0 0.0
    %1551 = vmatpush1.msra.mxu0 0.0
    %1552 = vmatprep.subr.mxu0 0.0
    %1553 = vmatpush1.msra.mxu0 0.0
    %1554 = vmatprep.subr.mxu0 0.0
    %1555 = vmatpush1.msra.mxu0 0.0
    %1556 = vmatprep.subr.mxu0 0.0
    %1557 = vmatpush1.msra.mxu0 0.0
    %1558 = vmatprep.subr.mxu0 0.0
    %1559 = vmatpush1.msra.mxu0 0.0
    %1560 = vmatprep.subr.mxu0 0.0
    %1561 = vmatpush1.msra.mxu0 0.0
    %1562 = vmatprep.subr.mxu0 0.0
    %1563 = vmatpush1.msra.mxu0 0.0
    %1564 = vmatprep.subr.mxu0 0.0
    %1565 = vmatpush1.msra.mxu0 0.0
    %1566 = vmatprep.subr.mxu0 0.0
    %1567 = vmatpush1.msra.mxu0 0.0
    %1568 = vmatprep.subr.mxu0 0.0
    %1569 = vmatpush1.msra.mxu0 0.0
    %1570 = vmatprep.subr.mxu0 0.0
    %1571 = vmatpush1.msra.mxu0 0.0
    %1572 = vmatprep.subr.mxu0 0.0
    %1573 = vmatpush1.msra.mxu0 0.0
    %1574 = vmatprep.subr.mxu0 0.0
    %1575 = vmatpush1.msra.mxu0 0.0
    %1576 = vmatprep.subr.mxu0 0.0
    %1577 = vmatpush1.msra.mxu0 0.0
    %1578 = vmatprep.subr.mxu0 0.0
    %1579 = vmatpush1.msra.mxu0 0.0
    %1580 = vmatprep.subr.mxu0 0.0
    %1581 = vmatpush1.msra.mxu0 0.0
    %1582 = vmatprep.mubr.f32.mxu0 0.0
    %1583 = vmatmul.mubr.f32.gmra.mrb[0].mxu0 %v1516
    %v1584 = vpop.f32.mrb[0].mxu0
    %v1585 = vadd.f32 0.0, %v1584
    %v1586 = vpop.f32.mrb[0].mxu0
    %1587 = vdwg.mxu0
    %v1589 = vrot.slane %v1585, 6
    %v1591 = vadd.f32 %v1505, %v1589
    %v1592 = vtanh.pop %v1591
    %1593 = vst.msk [vmem:[%s10] sm:$0xc] %vm280, %v1592
    %v1595 = vrot.slane %v1592, 2
    %v1596 = vsel %vm201, %v1595, 0
    %1598 = vmatprep.subr.mxu0 0.0
    %1599 = vmatpush1.msra.mxu0 %v1421
    %1600 = vmatprep.subr.mxu0 0.0
    %1601 = vmatpush1.msra.mxu0 %v1422
    %1602 = vmatprep.subr.mxu0 0.0
    %1603 = vmatpush1.msra.mxu0 %v1423
    %1604 = vmatprep.subr.mxu0 0.0
    %1605 = vmatpush1.msra.mxu0 %v1424
    %1606 = vmatprep.subr.mxu0 0.0
    %1607 = vmatpush1.msra.mxu0 0.0
    %1608 = vmatprep.subr.mxu0 0.0
    %1609 = vmatpush1.msra.mxu0 0.0
    %1610 = vmatprep.subr.mxu0 0.0
    %1611 = vmatpush1.msra.mxu0 0.0
    %1612 = vmatprep.subr.mxu0 0.0
    %1613 = vmatpush1.msra.mxu0 0.0
    %1614 = vmatprep.subr.mxu0 0.0
    %1615 = vmatpush1.msra.mxu0 0.0
    %1616 = vmatprep.subr.mxu0 0.0
    %1617 = vmatpush1.msra.mxu0 0.0
    %1618 = vmatprep.subr.mxu0 0.0
    %1619 = vmatpush1.msra.mxu0 0.0
    %1620 = vmatprep.subr.mxu0 0.0
    %1621 = vmatpush1.msra.mxu0 0.0
    %1622 = vmatprep.subr.mxu0 0.0
    %1623 = vmatpush1.msra.mxu0 0.0
    %1624 = vmatprep.subr.mxu0 0.0
    %1625 = vmatpush1.msra.mxu0 0.0
    %1626 = vmatprep.subr.mxu0 0.0
    %1627 = vmatpush1.msra.mxu0 0.0
    %1628 = vmatprep.subr.mxu0 0.0
    %1629 = vmatpush1.msra.mxu0 0.0
    %1630 = vmatprep.subr.mxu0 0.0
    %1631 = vmatpush1.msra.mxu0 0.0
    %1632 = vmatprep.subr.mxu0 0.0
    %1633 = vmatpush1.msra.mxu0 0.0
    %1634 = vmatprep.subr.mxu0 0.0
    %1635 = vmatpush1.msra.mxu0 0.0
    %1636 = vmatprep.subr.mxu0 0.0
    %1637 = vmatpush1.msra.mxu0 0.0
    %1638 = vmatprep.subr.mxu0 0.0
    %1639 = vmatpush1.msra.mxu0 0.0
    %1640 = vmatprep.subr.mxu0 0.0
    %1641 = vmatpush1.msra.mxu0 0.0
    %1642 = vmatprep.subr.mxu0 0.0
    %1643 = vmatpush1.msra.mxu0 0.0
    %1644 = vmatprep.subr.mxu0 0.0
    %1645 = vmatpush1.msra.mxu0 0.0
    %1646 = vmatprep.subr.mxu0 0.0
    %1647 = vmatpush1.msra.mxu0 0.0
    %1648 = vmatprep.subr.mxu0 0.0
    %1649 = vmatpush1.msra.mxu0 0.0
    %1650 = vmatprep.subr.mxu0 0.0
    %1651 = vmatpush1.msra.mxu0 0.0
    %1652 = vmatprep.subr.mxu0 0.0
    %1653 = vmatpush1.msra.mxu0 0.0
    %1654 = vmatprep.subr.mxu0 0.0
    %1655 = vmatpush1.msra.mxu0 0.0
    %1656 = vmatprep.subr.mxu0 0.0
    %1657 = vmatpush1.msra.mxu0 0.0
    %1658 = vmatprep.subr.mxu0 0.0
    %1659 = vmatpush1.msra.mxu0 0.0
    %1660 = vmatprep.subr.mxu0 0.0
    %1661 = vmatpush1.msra.mxu0 0.0
    %1662 = vmatprep.mubr.f32.mxu0 0.0
    %1663 = vmatmul.mubr.f32.gmra.mrb[0].mxu0 %v1596
    %v1664 = vpop.f32.mrb[0].mxu0
    %v1665 = vadd.f32 0.0, %v1664
    %v1666 = vpop.f32.mrb[0].mxu0
    %1667 = vdwg.mxu0
    %v1669 = vrot.slane %v1665, 4
    %v1671 = vadd.f32 %v1505, %v1669
    %v1672 = vtanh.pop %v1671
    %1673 = vst.msk [vmem:[%s10] sm:$0x30] %vm361, %v1672
    %v1675 = vrot.slane %v1672, 4
    %v1676 = vsel %vm201, %v1675, 0
    %1678 = vmatprep.subr.mxu0 0.0
    %1679 = vmatpush1.msra.mxu0 %v1421
    %1680 = vmatprep.subr.mxu0 0.0
    %1681 = vmatpush1.msra.mxu0 %v1422
    %1682 = vmatprep.subr.mxu0 0.0
    %1683 = vmatpush1.msra.mxu0 %v1423
    %1684 = vmatprep.subr.mxu0 0.0
    %1685 = vmatpush1.msra.mxu0 %v1424
    %1686 = vmatprep.subr.mxu0 0.0
    %1687 = vmatpush1.msra.mxu0 0.0
    %1688 = vmatprep.subr.mxu0 0.0
    %1689 = vmatpush1.msra.mxu0 0.0
    %1690 = vmatprep.subr.mxu0 0.0
    %1691 = vmatpush1.msra.mxu0 0.0
    %1692 = vmatprep.subr.mxu0 0.0
    %1693 = vmatpush1.msra.mxu0 0.0
    %1694 = vmatprep.subr.mxu0 0.0
    %1695 = vmatpush1.msra.mxu0 0.0
    %1696 = vmatprep.subr.mxu0 0.0
    %1697 = vmatpush1.msra.mxu0 0.0
    %1698 = vmatprep.subr.mxu0 0.0
    %1699 = vmatpush1.msra.mxu0 0.0
    %1700 = vmatprep.subr.mxu0 0.0
    %1701 = vmatpush1.msra.mxu0 0.0
    %1702 = vmatprep.subr.mxu0 0.0
    %1703 = vmatpush1.msra.mxu0 0.0
    %1704 = vmatprep.subr.mxu0 0.0
    %1705 = vmatpush1.msra.mxu0 0.0
    %1706 = vmatprep.subr.mxu0 0.0
    %1707 = vmatpush1.msra.mxu0 0.0
    %1708 = vmatprep.subr.mxu0 0.0
    %1709 = vmatpush1.msra.mxu0 0.0
    %1710 = vmatprep.subr.mxu0 0.0
    %1711 = vmatpush1.msra.mxu0 0.0
    %1712 = vmatprep.subr.mxu0 0.0
    %1713 = vmatpush1.msra.mxu0 0.0
    %1714 = vmatprep.subr.mxu0 0.0
    %1715 = vmatpush1.msra.mxu0 0.0
    %1716 = vmatprep.subr.mxu0 0.0
    %1717 = vmatpush1.msra.mxu0 0.0
    %1718 = vmatprep.subr.mxu0 0.0
    %1719 = vmatpush1.msra.mxu0 0.0
    %1720 = vmatprep.subr.mxu0 0.0
    %1721 = vmatpush1.msra.mxu0 0.0
    %1722 = vmatprep.subr.mxu0 0.0
    %1723 = vmatpush1.msra.mxu0 0.0
    %1724 = vmatprep.subr.mxu0 0.0
    %1725 = vmatpush1.msra.mxu0 0.0
    %1726 = vmatprep.subr.mxu0 0.0
    %1727 = vmatpush1.msra.mxu0 0.0
    %1728 = vmatprep.subr.mxu0 0.0
    %1729 = vmatpush1.msra.mxu0 0.0
    %1730 = vmatprep.subr.mxu0 0.0
    %1731 = vmatpush1.msra.mxu0 0.0
    %1732 = vmatprep.subr.mxu0 0.0
    %1733 = vmatpush1.msra.mxu0 0.0
    %1734 = vmatprep.subr.mxu0 0.0
    %1735 = vmatpush1.msra.mxu0 0.0
    %1736 = vmatprep.subr.mxu0 0.0
    %1737 = vmatpush1.msra.mxu0 0.0
    %1738 = vmatprep.subr.mxu0 0.0
    %1739 = vmatpush1.msra.mxu0 0.0
    %1740 = vmatprep.subr.mxu0 0.0
    %1741 = vmatpush1.msra.mxu0 0.0
    %1742 = vmatprep.mubr.f32.mxu0 0.0
    %1743 = vmatmul.mubr.f32.gmra.mrb[0].mxu0 %v1676
    %v1744 = vpop.f32.mrb[0].mxu0
    %v1745 = vadd.f32 0.0, %v1744
    %v1746 = vpop.f32.mrb[0].mxu0
    %1747 = vdwg.mxu0
    %v1749 = vrot.slane %v1745, 2
    %v1751 = vadd.f32 %v1505, %v1749
    %v1752 = vtanh.pop %v1751
    %1753 = vst.msk [vmem:[%s10] sm:$0xc0] %vm442, %v1752
    %v1755 = vrot.slane %v1752, 6
    %v1756 = vsel %vm201, %v1755, 0
    %1758 = vmatprep.subr.mxu0 0.0
    %1759 = vmatpush1.msra.mxu0 %v1421
    %1760 = vmatprep.subr.mxu0 0.0
    %1761 = vmatpush1.msra.mxu0 %v1422
    %1762 = vmatprep.subr.mxu0 0.0
    %1763 = vmatpush1.msra.mxu0 %v1423
    %1764 = vmatprep.subr.mxu0 0.0
    %1765 = vmatpush1.msra.mxu0 %v1424
    %1766 = vmatprep.subr.mxu0 0.0
    %1767 = vmatpush1.msra.mxu0 0.0
    %1768 = vmatprep.subr.mxu0 0.0
    %1769 = vmatpush1.msra.mxu0 0.0
    %1770 = vmatprep.subr.mxu0 0.0
    %1771 = vmatpush1.msra.mxu0 0.0
    %1772 = vmatprep.subr.mxu0 0.0
    %1773 = vmatpush1.msra.mxu0 0.0
    %1774 = vmatprep.subr.mxu0 0.0
    %1775 = vmatpush1.msra.mxu0 0.0
    %1776 = vmatprep.subr.mxu0 0.0
    %1777 = vmatpush1.msra.mxu0 0.0
    %1778 = vmatprep.subr.mxu0 0.0
    %1779 = vmatpush1.msra.mxu0 0.0
    %1780 = vmatprep.subr.mxu0 0.0
    %1781 = vmatpush1.msra.mxu0 0.0
    %1782 = vmatprep.subr.mxu0 0.0
    %1783 = vmatpush1.msra.mxu0 0.0
    %1784 = vmatprep.subr.mxu0 0.0
    %1785 = vmatpush1.msra.mxu0 0.0
    %1786 = vmatprep.subr.mxu0 0.0
    %1787 = vmatpush1.msra.mxu0 0.0
    %1788 = vmatprep.subr.mxu0 0.0
    %1789 = vmatpush1.msra.mxu0 0.0
    %1790 = vmatprep.subr.mxu0 0.0
    %1791 = vmatpush1.msra.mxu0 0.0
    %1792 = vmatprep.subr.mxu0 0.0
    %1793 = vmatpush1.msra.mxu0 0.0
    %1794 = vmatprep.subr.mxu0 0.0
    %1795 = vmatpush1.msra.mxu0 0.0
    %1796 = vmatprep.subr.mxu0 0.0
    %1797 = vmatpush1.msra.mxu0 0.0
    %1798 = vmatprep.subr.mxu0 0.0
    %1799 = vmatpush1.msra.mxu0 0.0
    %1800 = vmatprep.subr.mxu0 0.0
    %1801 = vmatpush1.msra.mxu0 0.0
    %1802 = vmatprep.subr.mxu0 0.0
    %1803 = vmatpush1.msra.mxu0 0.0
    %1804 = vmatprep.subr.mxu0 0.0
    %1805 = vmatpush1.msra.mxu0 0.0
    %1806 = vmatprep.subr.mxu0 0.0
    %1807 = vmatpush1.msra.mxu0 0.0
    %1808 = vmatprep.subr.mxu0 0.0
    %1809 = vmatpush1.msra.mxu0 0.0
    %1810 = vmatprep.subr.mxu0 0.0
    %1811 = vmatpush1.msra.mxu0 0.0
    %1812 = vmatprep.subr.mxu0 0.0
    %1813 = vmatpush1.msra.mxu0 0.0
    %1814 = vmatprep.subr.mxu0 0.0
    %1815 = vmatpush1.msra.mxu0 0.0
    %1816 = vmatprep.subr.mxu0 0.0
    %1817 = vmatpush1.msra.mxu0 0.0
    %1818 = vmatprep.subr.mxu0 0.0
    %1819 = vmatpush1.msra.mxu0 0.0
    %1820 = vmatprep.subr.mxu0 0.0
    %1821 = vmatpush1.msra.mxu0 0.0
    %1822 = vmatprep.mubr.f32.mxu0 0.0
    %1823 = vmatmul.mubr.f32.gmra.mrb[0].mxu0 %v1756
    %v1824 = vpop.f32.mrb[0].mxu0
    %v1825 = vadd.f32 0.0, %v1824
    %v1826 = vpop.f32.mrb[0].mxu0
    %1827 = vdwg.mxu0
    %v1828 = vadd.f32 %v1510, %v1825
    %v1829 = vtanh.pop %v1828
    %1830 = vst.msk [vmem:[%s10 + $0x8] sm:$0x3] %vm199, %v1829
    %v1832 = vsel %vm201, %v1829, 0
    %1834 = vmatprep.subr.mxu0 0.0
    %1835 = vmatpush1.msra.mxu0 %v1421
    %1836 = vmatprep.subr.mxu0 0.0
    %1837 = vmatpush1.msra.mxu0 %v1422
    %1838 = vmatprep.subr.mxu0 0.0
    %1839 = vmatpush1.msra.mxu0 %v1423
    %1840 = vmatprep.subr.mxu0 0.0
    %1841 = vmatpush1.msra.mxu0 %v1424
    %1842 = vmatprep.subr.mxu0 0.0
    %1843 = vmatpush1.msra.mxu0 0.0
    %1844 = vmatprep.subr.mxu0 0.0
    %1845 = vmatpush1.msra.mxu0 0.0
    %1846 = vmatprep.subr.mxu0 0.0
    %1847 = vmatpush1.msra.mxu0 0.0
    %1848 = vmatprep.subr.mxu0 0.0
    %1849 = vmatpush1.msra.mxu0 0.0
    %1850 = vmatprep.subr.mxu0 0.0
    %1851 = vmatpush1.msra.mxu0 0.0
    %1852 = vmatprep.subr.mxu0 0.0
    %1853 = vmatpush1.msra.mxu0 0.0
    %1854 = vmatprep.subr.mxu0 0.0
    %1855 = vmatpush1.msra.mxu0 0.0
    %1856 = vmatprep.subr.mxu0 0.0
    %1857 = vmatpush1.msra.mxu0 0.0
    %1858 = vmatprep.subr.mxu0 0.0
    %1859 = vmatpush1.msra.mxu0 0.0
    %1860 = vmatprep.subr.mxu0 0.0
    %1861 = vmatpush1.msra.mxu0 0.0
    %1862 = vmatprep.subr.mxu0 0.0
    %1863 = vmatpush1.msra.mxu0 0.0
    %1864 = vmatprep.subr.mxu0 0.0
    %1865 = vmatpush1.msra.mxu0 0.0
    %1866 = vmatprep.subr.mxu0 0.0
    %1867 = vmatpush1.msra.mxu0 0.0
    %1868 = vmatprep.subr.mxu0 0.0
    %1869 = vmatpush1.msra.mxu0 0.0
    %1870 = vmatprep.subr.mxu0 0.0
    %1871 = vmatpush1.msra.mxu0 0.0
    %1872 = vmatprep.subr.mxu0 0.0
    %1873 = vmatpush1.msra.mxu0 0.0
    %1874 = vmatprep.subr.mxu0 0.0
    %1875 = vmatpush1.msra.mxu0 0.0
    %1876 = vmatprep.subr.mxu0 0.0
    %1877 = vmatpush1.msra.mxu0 0.0
    %1878 = vmatprep.subr.mxu0 0.0
    %1879 = vmatpush1.msra.mxu0 0.0
    %1880 = vmatprep.subr.mxu0 0.0
    %1881 = vmatpush1.msra.mxu0 0.0
    %1882 = vmatprep.subr.mxu0 0.0
    %1883 = vmatpush1.msra.mxu0 0.0
    %1884 = vmatprep.subr.mxu0 0.0
    %1885 = vmatpush1.msra.mxu0 0.0
    %1886 = vmatprep.subr.mxu0 0.0
    %1887 = vmatpush1.msra.mxu0 0.0
    %1888 = vmatprep.subr.mxu0 0.0
    %1889 = vmatpush1.msra.mxu0 0.0
    %1890 = vmatprep.subr.mxu0 0.0
    %1891 = vmatpush1.msra.mxu0 0.0
    %1892 = vmatprep.subr.mxu0 0.0
    %1893 = vmatpush1.msra.mxu0 0.0
    %1894 = vmatprep.subr.mxu0 0.0
    %1895 = vmatpush1.msra.mxu0 0.0
    %1896 = vmatprep.subr.mxu0 0.0
    %1897 = vmatpush1.msra.mxu0 0.0
    %1898 = vmatprep.mubr.f32.mxu0 0.0
    %1899 = vmatmul.mubr.f32.gmra.mrb[0].mxu0 %v1832
    %v1900 = vpop.f32.mrb[0].mxu0
    %v1901 = vadd.f32 0.0, %v1900
    %v1902 = vpop.f32.mrb[0].mxu0
    %1903 = vdwg.mxu0
    %v1905 = vrot.slane %v1901, 6
    %v1907 = vadd.f32 %v1510, %v1905
    %v1908 = vtanh.pop %v1907
    %1909 = vst.msk [vmem:[%s10 + $0x8] sm:$0xc] %vm280, %v1908
    %v1911 = vrot.slane %v1908, 2
    %v1912 = vsel %vm201, %v1911, 0
    %1914 = vmatprep.subr.mxu0 0.0
    %1915 = vmatpush1.msra.mxu0 %v1421
    %1916 = vmatprep.subr.mxu0 0.0
    %1917 = vmatpush1.msra.mxu0 %v1422
    %1918 = vmatprep.subr.mxu0 0.0
    %1919 = vmatpush1.msra.mxu0 %v1423
    %1920 = vmatprep.subr.mxu0 0.0
    %1921 = vmatpush1.msra.mxu0 %v1424
    %1922 = vmatprep.subr.mxu0 0.0
    %1923 = vmatpush1.msra.mxu0 0.0
    %1924 = vmatprep.subr.mxu0 0.0
    %1925 = vmatpush1.msra.mxu0 0.0
    %1926 = vmatprep.subr.mxu0 0.0
    %1927 = vmatpush1.msra.mxu0 0.0
    %1928 = vmatprep.subr.mxu0 0.0
    %1929 = vmatpush1.msra.mxu0 0.0
    %1930 = vmatprep.subr.mxu0 0.0
    %1931 = vmatpush1.msra.mxu0 0.0
    %1932 = vmatprep.subr.mxu0 0.0
    %1933 = vmatpush1.msra.mxu0 0.0
    %1934 = vmatprep.subr.mxu0 0.0
    %1935 = vmatpush1.msra.mxu0 0.0
    %1936 = vmatprep.subr.mxu0 0.0
    %1937 = vmatpush1.msra.mxu0 0.0
    %1938 = vmatprep.subr.mxu0 0.0
    %1939 = vmatpush1.msra.mxu0 0.0
    %1940 = vmatprep.subr.mxu0 0.0
    %1941 = vmatpush1.msra.mxu0 0.0
    %1942 = vmatprep.subr.mxu0 0.0
    %1943 = vmatpush1.msra.mxu0 0.0
    %1944 = vmatprep.subr.mxu0 0.0
    %1945 = vmatpush1.msra.mxu0 0.0
    %1946 = vmatprep.subr.mxu0 0.0
    %1947 = vmatpush1.msra.mxu0 0.0
    %1948 = vmatprep.subr.mxu0 0.0
    %1949 = vmatpush1.msra.mxu0 0.0
    %1950 = vmatprep.subr.mxu0 0.0
    %1951 = vmatpush1.msra.mxu0 0.0
    %1952 = vmatprep.subr.mxu0 0.0
    %1953 = vmatpush1.msra.mxu0 0.0
    %1954 = vmatprep.subr.mxu0 0.0
    %1955 = vmatpush1.msra.mxu0 0.0
    %1956 = vmatprep.subr.mxu0 0.0
    %1957 = vmatpush1.msra.mxu0 0.0
    %1958 = vmatprep.subr.mxu0 0.0
    %1959 = vmatpush1.msra.mxu0 0.0
    %1960 = vmatprep.subr.mxu0 0.0
    %1961 = vmatpush1.msra.mxu0 0.0
    %1962 = vmatprep.subr.mxu0 0.0
    %1963 = vmatpush1.msra.mxu0 0.0
    %1964 = vmatprep.subr.mxu0 0.0
    %1965 = vmatpush1.msra.mxu0 0.0
    %1966 = vmatprep.subr.mxu0 0.0
    %1967 = vmatpush1.msra.mxu0 0.0
    %1968 = vmatprep.subr.mxu0 0.0
    %1969 = vmatpush1.msra.mxu0 0.0
    %1970 = vmatprep.subr.mxu0 0.0
    %1971 = vmatpush1.msra.mxu0 0.0
    %1972 = vmatprep.subr.mxu0 0.0
    %1973 = vmatpush1.msra.mxu0 0.0
    %1974 = vmatprep.subr.mxu0 0.0
    %1975 = vmatpush1.msra.mxu0 0.0
    %1976 = vmatprep.subr.mxu0 0.0
    %1977 = vmatpush1.msra.mxu0 0.0
    %1978 = vmatprep.mubr.f32.mxu0 0.0
    %1979 = vmatmul.mubr.f32.gmra.mrb[0].mxu0 %v1912
    %v1980 = vpop.f32.mrb[0].mxu0
    %v1981 = vadd.f32 0.0, %v1980
    %v1982 = vpop.f32.mrb[0].mxu0
    %1983 = vdwg.mxu0
    %v1985 = vrot.slane %v1981, 4
    %v1987 = vadd.f32 %v1510, %v1985
    %v1988 = vtanh.pop %v1987
    %1989 = vst.msk [vmem:[%s10 + $0x8] sm:$0x30] %vm361, %v1988
    %v1991 = vrot.slane %v1988, 4
    %v1992 = vsel %vm201, %v1991, 0
    %1994 = vmatprep.subr.mxu0 0.0
    %1995 = vmatpush1.msra.mxu0 %v1421
    %1996 = vmatprep.subr.mxu0 0.0
    %1997 = vmatpush1.msra.mxu0 %v1422
    %1998 = vmatprep.subr.mxu0 0.0
    %1999 = vmatpush1.msra.mxu0 %v1423
    %2000 = vmatprep.subr.mxu0 0.0
    %2001 = vmatpush1.msra.mxu0 %v1424
    %2002 = vmatprep.subr.mxu0 0.0
    %2003 = vmatpush1.msra.mxu0 0.0
    %2004 = vmatprep.subr.mxu0 0.0
    %2005 = vmatpush1.msra.mxu0 0.0
    %2006 = vmatprep.subr.mxu0 0.0
    %2007 = vmatpush1.msra.mxu0 0.0
    %2008 = vmatprep.subr.mxu0 0.0
    %2009 = vmatpush1.msra.mxu0 0.0
    %2010 = vmatprep.subr.mxu0 0.0
    %2011 = vmatpush1.msra.mxu0 0.0
    %2012 = vmatprep.subr.mxu0 0.0
    %2013 = vmatpush1.msra.mxu0 0.0
    %2014 = vmatprep.subr.mxu0 0.0
    %2015 = vmatpush1.msra.mxu0 0.0
    %2016 = vmatprep.subr.mxu0 0.0
    %2017 = vmatpush1.msra.mxu0 0.0
    %2018 = vmatprep.subr.mxu0 0.0
    %2019 = vmatpush1.msra.mxu0 0.0
    %2020 = vmatprep.subr.mxu0 0.0
    %2021 = vmatpush1.msra.mxu0 0.0
    %2022 = vmatprep.subr.mxu0 0.0
    %2023 = vmatpush1.msra.mxu0 0.0
    %2024 = vmatprep.subr.mxu0 0.0
    %2025 = vmatpush1.msra.mxu0 0.0
    %2026 = vmatprep.subr.mxu0 0.0
    %2027 = vmatpush1.msra.mxu0 0.0
    %2028 = vmatprep.subr.mxu0 0.0
    %2029 = vmatpush1.msra.mxu0 0.0
    %2030 = vmatprep.subr.mxu0 0.0
    %2031 = vmatpush1.msra.mxu0 0.0
    %2032 = vmatprep.subr.mxu0 0.0
    %2033 = vmatpush1.msra.mxu0 0.0
    %2034 = vmatprep.subr.mxu0 0.0
    %2035 = vmatpush1.msra.mxu0 0.0
    %2036 = vmatprep.subr.mxu0 0.0
    %2037 = vmatpush1.msra.mxu0 0.0
    %2038 = vmatprep.subr.mxu0 0.0
    %2039 = vmatpush1.msra.mxu0 0.0
    %2040 = vmatprep.subr.mxu0 0.0
    %2041 = vmatpush1.msra.mxu0 0.0
    %2042 = vmatprep.subr.mxu0 0.0
    %2043 = vmatpush1.msra.mxu0 0.0
    %2044 = vmatprep.subr.mxu0 0.0
    %2045 = vmatpush1.msra.mxu0 0.0
    %2046 = vmatprep.subr.mxu0 0.0
    %2047 = vmatpush1.msra.mxu0 0.0
    %2048 = vmatprep.subr.mxu0 0.0
    %2049 = vmatpush1.msra.mxu0 0.0
    %2050 = vmatprep.subr.mxu0 0.0
    %2051 = vmatpush1.msra.mxu0 0.0
    %2052 = vmatprep.subr.mxu0 0.0
    %2053 = vmatpush1.msra.mxu0 0.0
    %2054 = vmatprep.subr.mxu0 0.0
    %2055 = vmatpush1.msra.mxu0 0.0
    %2056 = vmatprep.subr.mxu0 0.0
    %2057 = vmatpush1.msra.mxu0 0.0
    %2058 = vmatprep.mubr.f32.mxu0 0.0
    %2059 = vmatmul.mubr.f32.gmra.mrb[0].mxu0 %v1992
    %v2060 = vpop.f32.mrb[0].mxu0
    %v2061 = vadd.f32 0.0, %v2060
    %v2062 = vpop.f32.mrb[0].mxu0
    %2063 = vdwg.mxu0
    %v2065 = vrot.slane %v2061, 2
    %v2067 = vadd.f32 %v1510, %v2065
    %v2068 = vtanh.pop %v2067
    %2069 = vst.msk [vmem:[%s10 + $0x8] sm:$0xc0] %vm442, %v2068
    // Predicated region
    $region62: #{encoder_forward.1} parent=1 // pred_check
      _
    $region63: #{encoder_forward.1} parent=1 // pred_check_branch
      %2071 = sbr.rel (0) target = $region65
    $region64: #{encoder_forward.1} parent=1 // pred_region
      _
    $region65: #{encoder_forward.1} parent=1 // pred_fallthru
      _
    // Predicated region
    $region66: #{encoder_forward.1} parent=1 // pred_check
      _
    $region67: #{encoder_forward.1} parent=1 // pred_check_branch
      %2073 = sbr.rel (0) target = $region69
    $region68: #{encoder_forward.1} parent=1 // pred_region
      _
    $region69: #{encoder_forward.1} parent=1 // pred_fallthru
      _
    %2074 = vsyncpa [#allocation4], 1
    %2075 = vsyncpa [#allocation6], 1
    %2076 = vsyncpa [#allocation9], 1

</llo_original>
